<compile_context>
chip_gen: v7x
topology: tpu7x:2x2x1
jax: 0.10.0
libtpu: 0.0.40
codegen_flags: <defaults>
</compile_context>

<pallas_src>
import functools
import math

import jax
import jax.numpy as jnp
from jax.experimental import pallas as pl
from jax.experimental.pallas import tpu as pltpu

BN_EPS = 1e-5
_CONV_ORDER = ("conv1", "conv2", "conv3", "shortcut")  # flattened param order per block
_KERNEL_SIZES = {"conv1": 8, "conv2": 5, "conv3": 3, "shortcut": 1}


# ----------------------------------------------------------------------------
# Fused Pallas kernel: full forward pass for one batch element per grid step
# ----------------------------------------------------------------------------
def _fused_resnet_features_kernel(x_ref, *rest, matmul_dtype):
    """rest = 24 param refs (3 blocks x 4 convs x [w2d, b2d]) followed by out_ref.

    x_ref:   (1, L, C_in)
    w2d ref: (K*C_in_conv, C_out)   BN scale already folded in
    b2d ref: (1, C_out)             folded BN shift (+ conv bias)
    out_ref: (1, 4, C_feat)         rows = [avg(x2), avg(x3), max(x2), max(x3)]
    """
    *param_refs, out_ref = rest
    x = x_ref[0].astype(jnp.float32)  # (L, C_in)
    L = x.shape[0]

    def conv_bn(h, w2d, b2d, K, relu):
        # 'same' 1-D conv as a single im2col matmul + folded-BN epilogue (f32 acc).
        Lh, Ci = h.shape
        if K == 1:
            cols = h
        else:
            pad_l = (K - 1) // 2
            pad_r = (K - 1) - pad_l
            xp = jnp.concatenate(
                [jnp.zeros((pad_l, Ci), h.dtype), h, jnp.zeros((pad_r, Ci), h.dtype)],
                axis=0,
            )  # (L + K - 1, Ci)
            cols = jnp.concatenate(
                [xp[k:k + Lh, :] for k in range(K)], axis=1
            )  # (L, K*Ci)
        y = jnp.dot(
            cols.astype(matmul_dtype),
            w2d.astype(matmul_dtype),
            preferred_element_type=jnp.float32,
        )
        y = y + b2d  # (L, Cout) + (1, Cout)
        return jnp.maximum(y, 0.0) if relu else y

    def block(h, refs):
        w1, b1, w2, b2, w3, b3, ws, bs = (r[...] for r in refs)
        sc = conv_bn(h, ws, bs, 1, relu=False)   # 1x1 shortcut + BN
        y = conv_bn(h, w1, b1, 8, relu=True)
        y = conv_bn(y, w2, b2, 5, relu=True)
        y = conv_bn(y, w3, b3, 3, relu=False)
        return jnp.maximum(y + sc, 0.0)

    x1 = block(x, param_refs[0:8])     # block1
    x2 = block(x1, param_refs[8:16])   # block2
    x3 = block(x2, param_refs[16:24])  # block3

    inv_l = jnp.float32(1.0 / L)
    feats = jnp.concatenate(
        [
            jnp.sum(x2, axis=0, keepdims=True) * inv_l,  # adaptive_avg_pool1d(x2, 1)
            jnp.sum(x3, axis=0, keepdims=True) * inv_l,  # adaptive_avg_pool1d(x3, 1)
            jnp.max(x2, axis=0, keepdims=True),          # adaptive_max_pool1d(x2, 1)
            jnp.max(x3, axis=0, keepdims=True),          # adaptive_max_pool1d(x3, 1)
        ],
        axis=0,
    )  # (4, C_feat)
    out_ref[0] = feats.astype(out_ref.dtype)


# ----------------------------------------------------------------------------
# BN folding and the pallas_call wrapper
# ----------------------------------------------------------------------------
def _fold_bn_identity(w, b):
    """Eval-mode BN with gamma=1, beta=0, mean=0, var=1 folded into the conv."""
    s = 1.0 / math.sqrt(1.0 + BN_EPS)
    return w * s, b * s


def resnet_combined_layers_features(x, params, *, matmul_dtype=jnp.float32):
    """x: (B, L, in_channels) -> (B, 8 * n_filters).  Single fused pallas_call.

    Set matmul_dtype=jnp.bfloat16 on v6e/v7x for extra MXU throughput (the BN/ReLU/
    residual epilogue and accumulation stay in f32).
    """
    B, L, Cin = x.shape
    c_feat = params["block3"]["conv3"][0].shape[-1]  # 2 * n_filters

    flat_args = [x]
    in_specs = [pl.BlockSpec((1, L, Cin), lambda b: (b, 0, 0))]
    flops = 0
    bytes_accessed = x.size * x.dtype.itemsize
    chan_in = Cin
    for blk in ("block1", "block2", "block3"):
        blk_in = chan_in
        for name in _CONV_ORDER:
            w, bias = params[blk][name]          # w: (K, Ci, Co), bias: (Co,)
            w, bias = _fold_bn_identity(w, bias)
            K, Ci, Co = w.shape
            w2d = jnp.asarray(w, jnp.float32).reshape(K * Ci, Co)
            b2d = jnp.asarray(bias, jnp.float32).reshape(1, Co)
            flat_args += [w2d, b2d]
            in_specs += [
                pl.BlockSpec((K * Ci, Co), lambda b: (0, 0)),
                pl.BlockSpec((1, Co), lambda b: (0, 0)),
            ]
            flops += 2 * B * L * K * Ci * Co
            bytes_accessed += (w2d.size + b2d.size) * 4
            chan_in = Co
        del blk_in
    bytes_accessed += B * 4 * c_feat * x.dtype.itemsize

    kernel = functools.partial(
        _fused_resnet_features_kernel, matmul_dtype=matmul_dtype
    )
    out3 = pl.pallas_call(
        kernel,
        out_shape=jax.ShapeDtypeStruct((B, 4, c_feat), x.dtype),
        grid_spec=pltpu.PrefetchScalarGridSpec(
            num_scalar_prefetch=0,
            grid=(B,),
            in_specs=in_specs,
            out_specs=pl.BlockSpec((1, 4, c_feat), lambda b: (b, 0, 0)),
        ),
        compiler_params=pltpu.CompilerParams(dimension_semantics=("parallel",)),
        cost_estimate=pl.CostEstimate(
            flops=flops, transcendentals=0, bytes_accessed=bytes_accessed
        ),
    )(*flat_args)
    # (B, 4, C_feat) row-major reshape == torch.cat([...], dim=1).squeeze(2)
    return out3.reshape(B, 4 * c_feat)


# ----------------------------------------------------------------------------
# Pure-JAX reference (XLA conv) for correctness cross-check
# ----------------------------------------------------------------------------
def _reference_forward(x, params):
    def conv_bn(h, w, b, relu):
        w, b = _fold_bn_identity(w, b)
        K = w.shape[0]
        pad_l = (K - 1) // 2
        pad_r = (K - 1) - pad_l
        y = jax.lax.conv_general_dilated(
            h, w, window_strides=(1,), padding=((pad_l, pad_r),),
            dimension_numbers=("NWC", "WIO", "NWC"),
            precision=jax.lax.Precision.HIGHEST,
        )
        y = y + b
        return jnp.maximum(y, 0.0) if relu else y

    def block(h, p):
        sc = conv_bn(h, *p["shortcut"], relu=False)
        y = conv_bn(h, *p["conv1"], relu=True)
        y = conv_bn(y, *p["conv2"], relu=True)
        y = conv_bn(y, *p["conv3"], relu=False)
        return jnp.maximum(y + sc, 0.0)

    x1 = block(x, params["block1"])
    x2 = block(x1, params["block2"])
    x3 = block(x2, params["block3"])
    return jnp.concatenate(
        [x2.mean(axis=1), x3.mean(axis=1), x2.max(axis=1), x3.max(axis=1)], axis=-1
    )


# ----------------------------------------------------------------------------
# Parameter init (deterministic, PyTorch Conv1d-style uniform)
# ----------------------------------------------------------------------------
def init_resnet_block(key, c_in, c_out):
    kernel_sizes = (8, 5, 3)
    in_chans = (c_in, c_out, c_out)
    keys = jax.random.split(key, 8)
    params = {}
    for i, (k, ci) in enumerate(zip(kernel_sizes, in_chans)):
        bound = 1.0 / math.sqrt(ci * k)
        w = jax.random.uniform(keys[2 * i], (k, ci, c_out), jnp.float32, -bound, bound)
        b = jax.random.uniform(keys[2 * i + 1], (c_out,), jnp.float32, -bound, bound)
        params[f"conv{i + 1}"] = (w, b)
    bound = 1.0 / math.sqrt(c_in)
    w = jax.random.uniform(keys[6], (1, c_in, c_out), jnp.float32, -bound, bound)
    b = jax.random.uniform(keys[7], (c_out,), jnp.float32, -bound, bound)
    params["shortcut"] = (w, b)
    return params


if __name__ == "__main__":
    # Small shapes: batch=2, seq=16, in_channels=4, n_filters=8
    B, L = 2, 16
    in_channels, n_filters = 4, 8

    key = jax.random.PRNGKey(0)
    kx, k1, k2, k3 = jax.random.split(key, 4)
    x = jax.random.normal(kx, (B, L, in_channels), jnp.float32)

    params = {
        "block1": init_resnet_block(k1, in_channels, n_filters),
        "block2": init_resnet_block(k2, n_filters, 2 * n_filters),
        "block3": init_resnet_block(k3, 2 * n_filters, 2 * n_filters),
    }

    fwd = jax.jit(resnet_combined_layers_features)
    out = jax.block_until_ready(fwd(x, params))
    assert out.shape == (B, 8 * n_filters), out.shape
    assert bool(jnp.all(jnp.isfinite(out)))

    ref = jax.block_until_ready(_reference_forward(x, params))
    assert bool(jnp.allclose(out, ref, rtol=1e-3, atol=1e-3)), (
        float(jnp.max(jnp.abs(out - ref)))
    )
    print("KERNEL_OK")
</pallas_src>

<mosaic_0001>
module attributes {stable_mosaic.version = 11 : i64} {
  func.func @_fused_resnet_features_kernel(%arg0: i32, %arg1: memref<1x16x4xf32, #tpu.memory_space<vmem>>, %arg2: memref<32x8xf32, #tpu.memory_space<vmem>>, %arg3: memref<1x8xf32, #tpu.memory_space<vmem>>, %arg4: memref<40x8xf32, #tpu.memory_space<vmem>>, %arg5: memref<1x8xf32, #tpu.memory_space<vmem>>, %arg6: memref<24x8xf32, #tpu.memory_space<vmem>>, %arg7: memref<1x8xf32, #tpu.memory_space<vmem>>, %arg8: memref<4x8xf32, #tpu.memory_space<vmem>>, %arg9: memref<1x8xf32, #tpu.memory_space<vmem>>, %arg10: memref<64x16xf32, #tpu.memory_space<vmem>>, %arg11: memref<1x16xf32, #tpu.memory_space<vmem>>, %arg12: memref<80x16xf32, #tpu.memory_space<vmem>>, %arg13: memref<1x16xf32, #tpu.memory_space<vmem>>, %arg14: memref<48x16xf32, #tpu.memory_space<vmem>>, %arg15: memref<1x16xf32, #tpu.memory_space<vmem>>, %arg16: memref<8x16xf32, #tpu.memory_space<vmem>>, %arg17: memref<1x16xf32, #tpu.memory_space<vmem>>, %arg18: memref<128x16xf32, #tpu.memory_space<vmem>>, %arg19: memref<1x16xf32, #tpu.memory_space<vmem>>, %arg20: memref<80x16xf32, #tpu.memory_space<vmem>>, %arg21: memref<1x16xf32, #tpu.memory_space<vmem>>, %arg22: memref<48x16xf32, #tpu.memory_space<vmem>>, %arg23: memref<1x16xf32, #tpu.memory_space<vmem>>, %arg24: memref<16x16xf32, #tpu.memory_space<vmem>>, %arg25: memref<1x16xf32, #tpu.memory_space<vmem>>, %arg26: memref<1x4x16xf32, #tpu.memory_space<vmem>>) attributes {dimension_semantics = [#tpu.dimension_semantics<parallel>], iteration_bounds = array<i64: 2>, scalar_prefetch = 0 : i64, scratch_operands = 0 : i64, tpu.core_type = #tpu.core_type<tc>, window_params = [{transform_indices = @transform_0, window_bounds = array<i64: 1, 16, 4>}, {pipeline_mode = #tpu.pipeline_mode<synchronous>, transform_indices = @transform_1, window_bounds = array<i64: 32, 8>}, {pipeline_mode = #tpu.pipeline_mode<synchronous>, transform_indices = @transform_2, window_bounds = array<i64: 1, 8>}, {pipeline_mode = #tpu.pipeline_mode<synchronous>, transform_indices = @transform_3, window_bounds = array<i64: 40, 8>}, {pipeline_mode = #tpu.pipeline_mode<synchronous>, transform_indices = @transform_4, window_bounds = array<i64: 1, 8>}, {pipeline_mode = #tpu.pipeline_mode<synchronous>, transform_indices = @transform_5, window_bounds = array<i64: 24, 8>}, {pipeline_mode = #tpu.pipeline_mode<synchronous>, transform_indices = @transform_6, window_bounds = array<i64: 1, 8>}, {pipeline_mode = #tpu.pipeline_mode<synchronous>, transform_indices = @transform_7, window_bounds = array<i64: 4, 8>}, {pipeline_mode = #tpu.pipeline_mode<synchronous>, transform_indices = @transform_8, window_bounds = array<i64: 1, 8>}, {pipeline_mode = #tpu.pipeline_mode<synchronous>, transform_indices = @transform_9, window_bounds = array<i64: 64, 16>}, {pipeline_mode = #tpu.pipeline_mode<synchronous>, transform_indices = @transform_10, window_bounds = array<i64: 1, 16>}, {pipeline_mode = #tpu.pipeline_mode<synchronous>, transform_indices = @transform_11, window_bounds = array<i64: 80, 16>}, {pipeline_mode = #tpu.pipeline_mode<synchronous>, transform_indices = @transform_12, window_bounds = array<i64: 1, 16>}, {pipeline_mode = #tpu.pipeline_mode<synchronous>, transform_indices = @transform_13, window_bounds = array<i64: 48, 16>}, {pipeline_mode = #tpu.pipeline_mode<synchronous>, transform_indices = @transform_14, window_bounds = array<i64: 1, 16>}, {pipeline_mode = #tpu.pipeline_mode<synchronous>, transform_indices = @transform_15, window_bounds = array<i64: 8, 16>}, {pipeline_mode = #tpu.pipeline_mode<synchronous>, transform_indices = @transform_16, window_bounds = array<i64: 1, 16>}, {pipeline_mode = #tpu.pipeline_mode<synchronous>, transform_indices = @transform_17, window_bounds = array<i64: 128, 16>}, {pipeline_mode = #tpu.pipeline_mode<synchronous>, transform_indices = @transform_18, window_bounds = array<i64: 1, 16>}, {pipeline_mode = #tpu.pipeline_mode<synchronous>, transform_indices = @transform_19, window_bounds = array<i64: 80, 16>}, {pipeline_mode = #tpu.pipeline_mode<synchronous>, transform_indices = @transform_20, window_bounds = array<i64: 1, 16>}, {pipeline_mode = #tpu.pipeline_mode<synchronous>, transform_indices = @transform_21, window_bounds = array<i64: 48, 16>}, {pipeline_mode = #tpu.pipeline_mode<synchronous>, transform_indices = @transform_22, window_bounds = array<i64: 1, 16>}, {pipeline_mode = #tpu.pipeline_mode<synchronous>, transform_indices = @transform_23, window_bounds = array<i64: 16, 16>}, {pipeline_mode = #tpu.pipeline_mode<synchronous>, transform_indices = @transform_24, window_bounds = array<i64: 1, 16>}, {transform_indices = @transform_25, window_bounds = array<i64: 1, 4, 16>}]} {
    %c0 = arith.constant 0 : index
    %c0_0 = arith.constant 0 : index
    %c0_1 = arith.constant 0 : index
    %0 = vector.load %arg1[%c0, %c0_0, %c0_1] : memref<1x16x4xf32, #tpu.memory_space<vmem>>, vector<1x16x4xf32>
    %1 = vector.shape_cast %0 : vector<1x16x4xf32> to vector<16x4xf32>
    %c0_2 = arith.constant 0 : index
    %c0_3 = arith.constant 0 : index
    %2 = vector.load %arg2[%c0_2, %c0_3] : memref<32x8xf32, #tpu.memory_space<vmem>>, vector<32x8xf32>
    %c0_4 = arith.constant 0 : index
    %c0_5 = arith.constant 0 : index
    %3 = vector.load %arg3[%c0_4, %c0_5] : memref<1x8xf32, #tpu.memory_space<vmem>>, vector<1x8xf32>
    %c0_6 = arith.constant 0 : index
    %c0_7 = arith.constant 0 : index
    %4 = vector.load %arg4[%c0_6, %c0_7] : memref<40x8xf32, #tpu.memory_space<vmem>>, vector<40x8xf32>
    %c0_8 = arith.constant 0 : index
    %c0_9 = arith.constant 0 : index
    %5 = vector.load %arg5[%c0_8, %c0_9] : memref<1x8xf32, #tpu.memory_space<vmem>>, vector<1x8xf32>
    %c0_10 = arith.constant 0 : index
    %c0_11 = arith.constant 0 : index
    %6 = vector.load %arg6[%c0_10, %c0_11] : memref<24x8xf32, #tpu.memory_space<vmem>>, vector<24x8xf32>
    %c0_12 = arith.constant 0 : index
    %c0_13 = arith.constant 0 : index
    %7 = vector.load %arg7[%c0_12, %c0_13] : memref<1x8xf32, #tpu.memory_space<vmem>>, vector<1x8xf32>
    %c0_14 = arith.constant 0 : index
    %c0_15 = arith.constant 0 : index
    %8 = vector.load %arg8[%c0_14, %c0_15] : memref<4x8xf32, #tpu.memory_space<vmem>>, vector<4x8xf32>
    %c0_16 = arith.constant 0 : index
    %c0_17 = arith.constant 0 : index
    %9 = vector.load %arg9[%c0_16, %c0_17] : memref<1x8xf32, #tpu.memory_space<vmem>>, vector<1x8xf32>
    %cst = arith.constant dense<0.000000e+00> : vector<16x8xf32>
    %10 = tpu.matmul %1, %8, %cst {dimension_numbers = #tpu.dot_dimension_numbers<[1], [0], [0], [1], [0, 0, 1, 1], [], []>} : vector<16x4xf32>, vector<4x8xf32>, vector<16x8xf32> -> vector<16x8xf32>
    %11 = vector.broadcast %9 : vector<1x8xf32> to vector<16x8xf32>
    %12 = arith.addf %10, %11 : vector<16x8xf32>
    %cst_18 = arith.constant 0.000000e+00 : f32
    %13 = vector.broadcast %cst_18 : f32 to vector<3x4xf32>
    %cst_19 = arith.constant 0.000000e+00 : f32
    %14 = vector.broadcast %cst_19 : f32 to vector<4x4xf32>
    %15 = tpu.concatenate %13, %1, %14 in 0 : vector<3x4xf32>, vector<16x4xf32>, vector<4x4xf32> -> vector<23x4xf32>
    %16 = vector.extract_strided_slice %15 {offsets = [0, 0], sizes = [16, 4], strides = [1, 1]} : vector<23x4xf32> to vector<16x4xf32>
    %17 = vector.extract_strided_slice %15 {offsets = [1, 0], sizes = [16, 4], strides = [1, 1]} : vector<23x4xf32> to vector<16x4xf32>
    %18 = vector.extract_strided_slice %15 {offsets = [2, 0], sizes = [16, 4], strides = [1, 1]} : vector<23x4xf32> to vector<16x4xf32>
    %19 = vector.extract_strided_slice %15 {offsets = [3, 0], sizes = [16, 4], strides = [1, 1]} : vector<23x4xf32> to vector<16x4xf32>
    %20 = vector.extract_strided_slice %15 {offsets = [4, 0], sizes = [16, 4], strides = [1, 1]} : vector<23x4xf32> to vector<16x4xf32>
    %21 = vector.extract_strided_slice %15 {offsets = [5, 0], sizes = [16, 4], strides = [1, 1]} : vector<23x4xf32> to vector<16x4xf32>
    %22 = vector.extract_strided_slice %15 {offsets = [6, 0], sizes = [16, 4], strides = [1, 1]} : vector<23x4xf32> to vector<16x4xf32>
    %23 = vector.extract_strided_slice %15 {offsets = [7, 0], sizes = [16, 4], strides = [1, 1]} : vector<23x4xf32> to vector<16x4xf32>
    %24 = tpu.concatenate %16, %17, %18, %19, %20, %21, %22, %23 in 1 : vector<16x4xf32>, vector<16x4xf32>, vector<16x4xf32>, vector<16x4xf32>, vector<16x4xf32>, vector<16x4xf32>, vector<16x4xf32>, vector<16x4xf32> -> vector<16x32xf32>
    %cst_20 = arith.constant dense<0.000000e+00> : vector<16x8xf32>
    %25 = tpu.matmul %24, %2, %cst_20 {dimension_numbers = #tpu.dot_dimension_numbers<[1], [0], [0], [1], [0, 0, 1, 1], [], []>} : vector<16x32xf32>, vector<32x8xf32>, vector<16x8xf32> -> vector<16x8xf32>
    %26 = vector.broadcast %3 : vector<1x8xf32> to vector<16x8xf32>
    %27 = arith.addf %25, %26 : vector<16x8xf32>
    %cst_21 = arith.constant 0.000000e+00 : f32
    %28 = vector.broadcast %cst_21 : f32 to vector<16x8xf32>
    %29 = arith.maximumf %27, %28 : vector<16x8xf32>
    %cst_22 = arith.constant 0.000000e+00 : f32
    %30 = vector.broadcast %cst_22 : f32 to vector<2x8xf32>
    %cst_23 = arith.constant 0.000000e+00 : f32
    %31 = vector.broadcast %cst_23 : f32 to vector<2x8xf32>
    %32 = tpu.concatenate %30, %29, %31 in 0 : vector<2x8xf32>, vector<16x8xf32>, vector<2x8xf32> -> vector<20x8xf32>
    %33 = vector.extract_strided_slice %32 {offsets = [0, 0], sizes = [16, 8], strides = [1, 1]} : vector<20x8xf32> to vector<16x8xf32>
    %34 = vector.extract_strided_slice %32 {offsets = [1, 0], sizes = [16, 8], strides = [1, 1]} : vector<20x8xf32> to vector<16x8xf32>
    %35 = vector.extract_strided_slice %32 {offsets = [2, 0], sizes = [16, 8], strides = [1, 1]} : vector<20x8xf32> to vector<16x8xf32>
    %36 = vector.extract_strided_slice %32 {offsets = [3, 0], sizes = [16, 8], strides = [1, 1]} : vector<20x8xf32> to vector<16x8xf32>
    %37 = vector.extract_strided_slice %32 {offsets = [4, 0], sizes = [16, 8], strides = [1, 1]} : vector<20x8xf32> to vector<16x8xf32>
    %38 = tpu.concatenate %33, %34, %35, %36, %37 in 1 : vector<16x8xf32>, vector<16x8xf32>, vector<16x8xf32>, vector<16x8xf32>, vector<16x8xf32> -> vector<16x40xf32>
    %cst_24 = arith.constant dense<0.000000e+00> : vector<16x8xf32>
    %39 = tpu.matmul %38, %4, %cst_24 {dimension_numbers = #tpu.dot_dimension_numbers<[1], [0], [0], [1], [0, 0, 1, 1], [], []>} : vector<16x40xf32>, vector<40x8xf32>, vector<16x8xf32> -> vector<16x8xf32>
    %40 = vector.broadcast %5 : vector<1x8xf32> to vector<16x8xf32>
    %41 = arith.addf %39, %40 : vector<16x8xf32>
    %cst_25 = arith.constant 0.000000e+00 : f32
    %42 = vector.broadcast %cst_25 : f32 to vector<16x8xf32>
    %43 = arith.maximumf %41, %42 : vector<16x8xf32>
    %cst_26 = arith.constant 0.000000e+00 : f32
    %44 = vector.broadcast %cst_26 : f32 to vector<1x8xf32>
    %cst_27 = arith.constant 0.000000e+00 : f32
    %45 = vector.broadcast %cst_27 : f32 to vector<1x8xf32>
    %46 = tpu.concatenate %44, %43, %45 in 0 : vector<1x8xf32>, vector<16x8xf32>, vector<1x8xf32> -> vector<18x8xf32>
    %47 = vector.extract_strided_slice %46 {offsets = [0, 0], sizes = [16, 8], strides = [1, 1]} : vector<18x8xf32> to vector<16x8xf32>
    %48 = vector.extract_strided_slice %46 {offsets = [1, 0], sizes = [16, 8], strides = [1, 1]} : vector<18x8xf32> to vector<16x8xf32>
    %49 = vector.extract_strided_slice %46 {offsets = [2, 0], sizes = [16, 8], strides = [1, 1]} : vector<18x8xf32> to vector<16x8xf32>
    %50 = tpu.concatenate %47, %48, %49 in 1 : vector<16x8xf32>, vector<16x8xf32>, vector<16x8xf32> -> vector<16x24xf32>
    %cst_28 = arith.constant dense<0.000000e+00> : vector<16x8xf32>
    %51 = tpu.matmul %50, %6, %cst_28 {dimension_numbers = #tpu.dot_dimension_numbers<[1], [0], [0], [1], [0, 0, 1, 1], [], []>} : vector<16x24xf32>, vector<24x8xf32>, vector<16x8xf32> -> vector<16x8xf32>
    %52 = vector.broadcast %7 : vector<1x8xf32> to vector<16x8xf32>
    %53 = arith.addf %51, %52 : vector<16x8xf32>
    %54 = arith.addf %53, %12 : vector<16x8xf32>
    %cst_29 = arith.constant 0.000000e+00 : f32
    %55 = vector.broadcast %cst_29 : f32 to vector<16x8xf32>
    %56 = arith.maximumf %54, %55 : vector<16x8xf32>
    %c0_30 = arith.constant 0 : index
    %c0_31 = arith.constant 0 : index
    %57 = vector.load %arg10[%c0_30, %c0_31] : memref<64x16xf32, #tpu.memory_space<vmem>>, vector<64x16xf32>
    %c0_32 = arith.constant 0 : index
    %c0_33 = arith.constant 0 : index
    %58 = vector.load %arg11[%c0_32, %c0_33] : memref<1x16xf32, #tpu.memory_space<vmem>>, vector<1x16xf32>
    %c0_34 = arith.constant 0 : index
    %c0_35 = arith.constant 0 : index
    %59 = vector.load %arg12[%c0_34, %c0_35] : memref<80x16xf32, #tpu.memory_space<vmem>>, vector<80x16xf32>
    %c0_36 = arith.constant 0 : index
    %c0_37 = arith.constant 0 : index
    %60 = vector.load %arg13[%c0_36, %c0_37] : memref<1x16xf32, #tpu.memory_space<vmem>>, vector<1x16xf32>
    %c0_38 = arith.constant 0 : index
    %c0_39 = arith.constant 0 : index
    %61 = vector.load %arg14[%c0_38, %c0_39] : memref<48x16xf32, #tpu.memory_space<vmem>>, vector<48x16xf32>
    %c0_40 = arith.constant 0 : index
    %c0_41 = arith.constant 0 : index
    %62 = vector.load %arg15[%c0_40, %c0_41] : memref<1x16xf32, #tpu.memory_space<vmem>>, vector<1x16xf32>
    %c0_42 = arith.constant 0 : index
    %c0_43 = arith.constant 0 : index
    %63 = vector.load %arg16[%c0_42, %c0_43] : memref<8x16xf32, #tpu.memory_space<vmem>>, vector<8x16xf32>
    %c0_44 = arith.constant 0 : index
    %c0_45 = arith.constant 0 : index
    %64 = vector.load %arg17[%c0_44, %c0_45] : memref<1x16xf32, #tpu.memory_space<vmem>>, vector<1x16xf32>
    %cst_46 = arith.constant dense<0.000000e+00> : vector<16x16xf32>
    %65 = tpu.matmul %56, %63, %cst_46 {dimension_numbers = #tpu.dot_dimension_numbers<[1], [0], [0], [1], [0, 0, 1, 1], [], []>} : vector<16x8xf32>, vector<8x16xf32>, vector<16x16xf32> -> vector<16x16xf32>
    %66 = vector.broadcast %64 : vector<1x16xf32> to vector<16x16xf32>
    %67 = arith.addf %65, %66 : vector<16x16xf32>
    %cst_47 = arith.constant 0.000000e+00 : f32
    %68 = vector.broadcast %cst_47 : f32 to vector<3x8xf32>
    %cst_48 = arith.constant 0.000000e+00 : f32
    %69 = vector.broadcast %cst_48 : f32 to vector<4x8xf32>
    %70 = tpu.concatenate %68, %56, %69 in 0 : vector<3x8xf32>, vector<16x8xf32>, vector<4x8xf32> -> vector<23x8xf32>
    %71 = vector.extract_strided_slice %70 {offsets = [0, 0], sizes = [16, 8], strides = [1, 1]} : vector<23x8xf32> to vector<16x8xf32>
    %72 = vector.extract_strided_slice %70 {offsets = [1, 0], sizes = [16, 8], strides = [1, 1]} : vector<23x8xf32> to vector<16x8xf32>
    %73 = vector.extract_strided_slice %70 {offsets = [2, 0], sizes = [16, 8], strides = [1, 1]} : vector<23x8xf32> to vector<16x8xf32>
    %74 = vector.extract_strided_slice %70 {offsets = [3, 0], sizes = [16, 8], strides = [1, 1]} : vector<23x8xf32> to vector<16x8xf32>
    %75 = vector.extract_strided_slice %70 {offsets = [4, 0], sizes = [16, 8], strides = [1, 1]} : vector<23x8xf32> to vector<16x8xf32>
    %76 = vector.extract_strided_slice %70 {offsets = [5, 0], sizes = [16, 8], strides = [1, 1]} : vector<23x8xf32> to vector<16x8xf32>
    %77 = vector.extract_strided_slice %70 {offsets = [6, 0], sizes = [16, 8], strides = [1, 1]} : vector<23x8xf32> to vector<16x8xf32>
    %78 = vector.extract_strided_slice %70 {offsets = [7, 0], sizes = [16, 8], strides = [1, 1]} : vector<23x8xf32> to vector<16x8xf32>
    %79 = tpu.concatenate %71, %72, %73, %74, %75, %76, %77, %78 in 1 : vector<16x8xf32>, vector<16x8xf32>, vector<16x8xf32>, vector<16x8xf32>, vector<16x8xf32>, vector<16x8xf32>, vector<16x8xf32>, vector<16x8xf32> -> vector<16x64xf32>
    %cst_49 = arith.constant dense<0.000000e+00> : vector<16x16xf32>
    %80 = tpu.matmul %79, %57, %cst_49 {dimension_numbers = #tpu.dot_dimension_numbers<[1], [0], [0], [1], [0, 0, 1, 1], [], []>} : vector<16x64xf32>, vector<64x16xf32>, vector<16x16xf32> -> vector<16x16xf32>
    %81 = vector.broadcast %58 : vector<1x16xf32> to vector<16x16xf32>
    %82 = arith.addf %80, %81 : vector<16x16xf32>
    %cst_50 = arith.constant 0.000000e+00 : f32
    %83 = vector.broadcast %cst_50 : f32 to vector<16x16xf32>
    %84 = arith.maximumf %82, %83 : vector<16x16xf32>
    %cst_51 = arith.constant 0.000000e+00 : f32
    %85 = vector.broadcast %cst_51 : f32 to vector<2x16xf32>
    %cst_52 = arith.constant 0.000000e+00 : f32
    %86 = vector.broadcast %cst_52 : f32 to vector<2x16xf32>
    %87 = tpu.concatenate %85, %84, %86 in 0 : vector<2x16xf32>, vector<16x16xf32>, vector<2x16xf32> -> vector<20x16xf32>
    %88 = vector.extract_strided_slice %87 {offsets = [0, 0], sizes = [16, 16], strides = [1, 1]} : vector<20x16xf32> to vector<16x16xf32>
    %89 = vector.extract_strided_slice %87 {offsets = [1, 0], sizes = [16, 16], strides = [1, 1]} : vector<20x16xf32> to vector<16x16xf32>
    %90 = vector.extract_strided_slice %87 {offsets = [2, 0], sizes = [16, 16], strides = [1, 1]} : vector<20x16xf32> to vector<16x16xf32>
    %91 = vector.extract_strided_slice %87 {offsets = [3, 0], sizes = [16, 16], strides = [1, 1]} : vector<20x16xf32> to vector<16x16xf32>
    %92 = vector.extract_strided_slice %87 {offsets = [4, 0], sizes = [16, 16], strides = [1, 1]} : vector<20x16xf32> to vector<16x16xf32>
    %93 = tpu.concatenate %88, %89, %90, %91, %92 in 1 : vector<16x16xf32>, vector<16x16xf32>, vector<16x16xf32>, vector<16x16xf32>, vector<16x16xf32> -> vector<16x80xf32>
    %cst_53 = arith.constant dense<0.000000e+00> : vector<16x16xf32>
    %94 = tpu.matmul %93, %59, %cst_53 {dimension_numbers = #tpu.dot_dimension_numbers<[1], [0], [0], [1], [0, 0, 1, 1], [], []>} : vector<16x80xf32>, vector<80x16xf32>, vector<16x16xf32> -> vector<16x16xf32>
    %95 = vector.broadcast %60 : vector<1x16xf32> to vector<16x16xf32>
    %96 = arith.addf %94, %95 : vector<16x16xf32>
    %cst_54 = arith.constant 0.000000e+00 : f32
    %97 = vector.broadcast %cst_54 : f32 to vector<16x16xf32>
    %98 = arith.maximumf %96, %97 : vector<16x16xf32>
    %cst_55 = arith.constant 0.000000e+00 : f32
    %99 = vector.broadcast %cst_55 : f32 to vector<1x16xf32>
    %cst_56 = arith.constant 0.000000e+00 : f32
    %100 = vector.broadcast %cst_56 : f32 to vector<1x16xf32>
    %101 = tpu.concatenate %99, %98, %100 in 0 : vector<1x16xf32>, vector<16x16xf32>, vector<1x16xf32> -> vector<18x16xf32>
    %102 = vector.extract_strided_slice %101 {offsets = [0, 0], sizes = [16, 16], strides = [1, 1]} : vector<18x16xf32> to vector<16x16xf32>
    %103 = vector.extract_strided_slice %101 {offsets = [1, 0], sizes = [16, 16], strides = [1, 1]} : vector<18x16xf32> to vector<16x16xf32>
    %104 = vector.extract_strided_slice %101 {offsets = [2, 0], sizes = [16, 16], strides = [1, 1]} : vector<18x16xf32> to vector<16x16xf32>
    %105 = tpu.concatenate %102, %103, %104 in 1 : vector<16x16xf32>, vector<16x16xf32>, vector<16x16xf32> -> vector<16x48xf32>
    %cst_57 = arith.constant dense<0.000000e+00> : vector<16x16xf32>
    %106 = tpu.matmul %105, %61, %cst_57 {dimension_numbers = #tpu.dot_dimension_numbers<[1], [0], [0], [1], [0, 0, 1, 1], [], []>} : vector<16x48xf32>, vector<48x16xf32>, vector<16x16xf32> -> vector<16x16xf32>
    %107 = vector.broadcast %62 : vector<1x16xf32> to vector<16x16xf32>
    %108 = arith.addf %106, %107 : vector<16x16xf32>
    %109 = arith.addf %108, %67 : vector<16x16xf32>
    %cst_58 = arith.constant 0.000000e+00 : f32
    %110 = vector.broadcast %cst_58 : f32 to vector<16x16xf32>
    %111 = arith.maximumf %109, %110 : vector<16x16xf32>
    %c0_59 = arith.constant 0 : index
    %c0_60 = arith.constant 0 : index
    %112 = vector.load %arg18[%c0_59, %c0_60] : memref<128x16xf32, #tpu.memory_space<vmem>>, vector<128x16xf32>
    %c0_61 = arith.constant 0 : index
    %c0_62 = arith.constant 0 : index
    %113 = vector.load %arg19[%c0_61, %c0_62] : memref<1x16xf32, #tpu.memory_space<vmem>>, vector<1x16xf32>
    %c0_63 = arith.constant 0 : index
    %c0_64 = arith.constant 0 : index
    %114 = vector.load %arg20[%c0_63, %c0_64] : memref<80x16xf32, #tpu.memory_space<vmem>>, vector<80x16xf32>
    %c0_65 = arith.constant 0 : index
    %c0_66 = arith.constant 0 : index
    %115 = vector.load %arg21[%c0_65, %c0_66] : memref<1x16xf32, #tpu.memory_space<vmem>>, vector<1x16xf32>
    %c0_67 = arith.constant 0 : index
    %c0_68 = arith.constant 0 : index
    %116 = vector.load %arg22[%c0_67, %c0_68] : memref<48x16xf32, #tpu.memory_space<vmem>>, vector<48x16xf32>
    %c0_69 = arith.constant 0 : index
    %c0_70 = arith.constant 0 : index
    %117 = vector.load %arg23[%c0_69, %c0_70] : memref<1x16xf32, #tpu.memory_space<vmem>>, vector<1x16xf32>
    %c0_71 = arith.constant 0 : index
    %c0_72 = arith.constant 0 : index
    %118 = vector.load %arg24[%c0_71, %c0_72] : memref<16x16xf32, #tpu.memory_space<vmem>>, vector<16x16xf32>
    %c0_73 = arith.constant 0 : index
    %c0_74 = arith.constant 0 : index
    %119 = vector.load %arg25[%c0_73, %c0_74] : memref<1x16xf32, #tpu.memory_space<vmem>>, vector<1x16xf32>
    %cst_75 = arith.constant dense<0.000000e+00> : vector<16x16xf32>
    %120 = tpu.matmul %111, %118, %cst_75 {dimension_numbers = #tpu.dot_dimension_numbers<[1], [0], [0], [1], [0, 0, 1, 1], [], []>} : vector<16x16xf32>, vector<16x16xf32>, vector<16x16xf32> -> vector<16x16xf32>
    %121 = vector.broadcast %119 : vector<1x16xf32> to vector<16x16xf32>
    %122 = arith.addf %120, %121 : vector<16x16xf32>
    %cst_76 = arith.constant 0.000000e+00 : f32
    %123 = vector.broadcast %cst_76 : f32 to vector<3x16xf32>
    %cst_77 = arith.constant 0.000000e+00 : f32
    %124 = vector.broadcast %cst_77 : f32 to vector<4x16xf32>
    %125 = tpu.concatenate %123, %111, %124 in 0 : vector<3x16xf32>, vector<16x16xf32>, vector<4x16xf32> -> vector<23x16xf32>
    %126 = vector.extract_strided_slice %125 {offsets = [0, 0], sizes = [16, 16], strides = [1, 1]} : vector<23x16xf32> to vector<16x16xf32>
    %127 = vector.extract_strided_slice %125 {offsets = [1, 0], sizes = [16, 16], strides = [1, 1]} : vector<23x16xf32> to vector<16x16xf32>
    %128 = vector.extract_strided_slice %125 {offsets = [2, 0], sizes = [16, 16], strides = [1, 1]} : vector<23x16xf32> to vector<16x16xf32>
    %129 = vector.extract_strided_slice %125 {offsets = [3, 0], sizes = [16, 16], strides = [1, 1]} : vector<23x16xf32> to vector<16x16xf32>
    %130 = vector.extract_strided_slice %125 {offsets = [4, 0], sizes = [16, 16], strides = [1, 1]} : vector<23x16xf32> to vector<16x16xf32>
    %131 = vector.extract_strided_slice %125 {offsets = [5, 0], sizes = [16, 16], strides = [1, 1]} : vector<23x16xf32> to vector<16x16xf32>
    %132 = vector.extract_strided_slice %125 {offsets = [6, 0], sizes = [16, 16], strides = [1, 1]} : vector<23x16xf32> to vector<16x16xf32>
    %133 = vector.extract_strided_slice %125 {offsets = [7, 0], sizes = [16, 16], strides = [1, 1]} : vector<23x16xf32> to vector<16x16xf32>
    %134 = tpu.concatenate %126, %127, %128, %129, %130, %131, %132, %133 in 1 : vector<16x16xf32>, vector<16x16xf32>, vector<16x16xf32>, vector<16x16xf32>, vector<16x16xf32>, vector<16x16xf32>, vector<16x16xf32>, vector<16x16xf32> -> vector<16x128xf32>
    %cst_78 = arith.constant dense<0.000000e+00> : vector<16x16xf32>
    %135 = tpu.matmul %134, %112, %cst_78 {dimension_numbers = #tpu.dot_dimension_numbers<[1], [0], [0], [1], [0, 0, 1, 1], [], []>} : vector<16x128xf32>, vector<128x16xf32>, vector<16x16xf32> -> vector<16x16xf32>
    %136 = vector.broadcast %113 : vector<1x16xf32> to vector<16x16xf32>
    %137 = arith.addf %135, %136 : vector<16x16xf32>
    %cst_79 = arith.constant 0.000000e+00 : f32
    %138 = vector.broadcast %cst_79 : f32 to vector<16x16xf32>
    %139 = arith.maximumf %137, %138 : vector<16x16xf32>
    %cst_80 = arith.constant 0.000000e+00 : f32
    %140 = vector.broadcast %cst_80 : f32 to vector<2x16xf32>
    %cst_81 = arith.constant 0.000000e+00 : f32
    %141 = vector.broadcast %cst_81 : f32 to vector<2x16xf32>
    %142 = tpu.concatenate %140, %139, %141 in 0 : vector<2x16xf32>, vector<16x16xf32>, vector<2x16xf32> -> vector<20x16xf32>
    %143 = vector.extract_strided_slice %142 {offsets = [0, 0], sizes = [16, 16], strides = [1, 1]} : vector<20x16xf32> to vector<16x16xf32>
    %144 = vector.extract_strided_slice %142 {offsets = [1, 0], sizes = [16, 16], strides = [1, 1]} : vector<20x16xf32> to vector<16x16xf32>
    %145 = vector.extract_strided_slice %142 {offsets = [2, 0], sizes = [16, 16], strides = [1, 1]} : vector<20x16xf32> to vector<16x16xf32>
    %146 = vector.extract_strided_slice %142 {offsets = [3, 0], sizes = [16, 16], strides = [1, 1]} : vector<20x16xf32> to vector<16x16xf32>
    %147 = vector.extract_strided_slice %142 {offsets = [4, 0], sizes = [16, 16], strides = [1, 1]} : vector<20x16xf32> to vector<16x16xf32>
    %148 = tpu.concatenate %143, %144, %145, %146, %147 in 1 : vector<16x16xf32>, vector<16x16xf32>, vector<16x16xf32>, vector<16x16xf32>, vector<16x16xf32> -> vector<16x80xf32>
    %cst_82 = arith.constant dense<0.000000e+00> : vector<16x16xf32>
    %149 = tpu.matmul %148, %114, %cst_82 {dimension_numbers = #tpu.dot_dimension_numbers<[1], [0], [0], [1], [0, 0, 1, 1], [], []>} : vector<16x80xf32>, vector<80x16xf32>, vector<16x16xf32> -> vector<16x16xf32>
    %150 = vector.broadcast %115 : vector<1x16xf32> to vector<16x16xf32>
    %151 = arith.addf %149, %150 : vector<16x16xf32>
    %cst_83 = arith.constant 0.000000e+00 : f32
    %152 = vector.broadcast %cst_83 : f32 to vector<16x16xf32>
    %153 = arith.maximumf %151, %152 : vector<16x16xf32>
    %cst_84 = arith.constant 0.000000e+00 : f32
    %154 = vector.broadcast %cst_84 : f32 to vector<1x16xf32>
    %cst_85 = arith.constant 0.000000e+00 : f32
    %155 = vector.broadcast %cst_85 : f32 to vector<1x16xf32>
    %156 = tpu.concatenate %154, %153, %155 in 0 : vector<1x16xf32>, vector<16x16xf32>, vector<1x16xf32> -> vector<18x16xf32>
    %157 = vector.extract_strided_slice %156 {offsets = [0, 0], sizes = [16, 16], strides = [1, 1]} : vector<18x16xf32> to vector<16x16xf32>
    %158 = vector.extract_strided_slice %156 {offsets = [1, 0], sizes = [16, 16], strides = [1, 1]} : vector<18x16xf32> to vector<16x16xf32>
    %159 = vector.extract_strided_slice %156 {offsets = [2, 0], sizes = [16, 16], strides = [1, 1]} : vector<18x16xf32> to vector<16x16xf32>
    %160 = tpu.concatenate %157, %158, %159 in 1 : vector<16x16xf32>, vector<16x16xf32>, vector<16x16xf32> -> vector<16x48xf32>
    %cst_86 = arith.constant dense<0.000000e+00> : vector<16x16xf32>
    %161 = tpu.matmul %160, %116, %cst_86 {dimension_numbers = #tpu.dot_dimension_numbers<[1], [0], [0], [1], [0, 0, 1, 1], [], []>} : vector<16x48xf32>, vector<48x16xf32>, vector<16x16xf32> -> vector<16x16xf32>
    %162 = vector.broadcast %117 : vector<1x16xf32> to vector<16x16xf32>
    %163 = arith.addf %161, %162 : vector<16x16xf32>
    %164 = arith.addf %163, %122 : vector<16x16xf32>
    %cst_87 = arith.constant 0.000000e+00 : f32
    %165 = vector.broadcast %cst_87 : f32 to vector<16x16xf32>
    %166 = arith.maximumf %164, %165 : vector<16x16xf32>
    %cst_88 = arith.constant dense<0.000000e+00> : vector<16xf32>
    %167 = vector.multi_reduction <add>, %111, %cst_88 [0] : vector<16x16xf32> to vector<16xf32>
    %168 = vector.shape_cast %167 : vector<16xf32> to vector<1x16xf32>
    %cst_89 = arith.constant 6.250000e-02 : f32
    %169 = vector.broadcast %cst_89 : f32 to vector<1x16xf32>
    %170 = arith.mulf %168, %169 : vector<1x16xf32>
    %cst_90 = arith.constant dense<0.000000e+00> : vector<16xf32>
    %171 = vector.multi_reduction <add>, %166, %cst_90 [0] : vector<16x16xf32> to vector<16xf32>
    %172 = vector.shape_cast %171 : vector<16xf32> to vector<1x16xf32>
    %cst_91 = arith.constant 6.250000e-02 : f32
    %173 = vector.broadcast %cst_91 : f32 to vector<1x16xf32>
    %174 = arith.mulf %172, %173 : vector<1x16xf32>
    %cst_92 = arith.constant dense<0xFF800000> : vector<16xf32>
    %175 = vector.multi_reduction <maximumf>, %111, %cst_92 [0] : vector<16x16xf32> to vector<16xf32>
    %176 = vector.shape_cast %175 : vector<16xf32> to vector<1x16xf32>
    %cst_93 = arith.constant dense<0xFF800000> : vector<16xf32>
    %177 = vector.multi_reduction <maximumf>, %166, %cst_93 [0] : vector<16x16xf32> to vector<16xf32>
    %178 = vector.shape_cast %177 : vector<16xf32> to vector<1x16xf32>
    %179 = tpu.concatenate %170, %174, %176, %178 in 0 : vector<1x16xf32>, vector<1x16xf32>, vector<1x16xf32>, vector<1x16xf32> -> vector<4x16xf32>
    %c0_94 = arith.constant 0 : index
    %c0_95 = arith.constant 0 : index
    %c0_96 = arith.constant 0 : index
    %180 = vector.load %arg26[%c0_94, %c0_95, %c0_96] : memref<1x4x16xf32, #tpu.memory_space<vmem>>, vector<1x4x16xf32>
    %181 = vector.shape_cast %180 : vector<1x4x16xf32> to vector<4x16xf32>
    %182 = vector.shape_cast %179 : vector<4x16xf32> to vector<1x4x16xf32>
    tpu.vector_store %arg26[%c0_94, %c0_95, %c0_96], %182 {strides = array<i32>} : memref<1x4x16xf32, #tpu.memory_space<vmem>>, vector<1x4x16xf32>,
    return
  }
  func.func @transform_0(%arg0: i32) -> (i32, i32, i32) {
    %c0_i32 = arith.constant 0 : i32
    %c0_i32_0 = arith.constant 0 : i32
    %c0_i32_1 = arith.constant 0 : i32
    return %arg0, %c0_i32, %c0_i32_0 : i32, i32, i32
  }
  func.func @transform_1(%arg0: i32) -> (i32, i32) {
    %c0_i32 = arith.constant 0 : i32
    %c0_i32_0 = arith.constant 0 : i32
    %c0_i32_1 = arith.constant 0 : i32
    return %c0_i32, %c0_i32_0 : i32, i32
  }
  func.func @transform_2(%arg0: i32) -> (i32, i32) {
    %c0_i32 = arith.constant 0 : i32
    %c0_i32_0 = arith.constant 0 : i32
    %c0_i32_1 = arith.constant 0 : i32
    return %c0_i32, %c0_i32_0 : i32, i32
  }
  func.func @transform_3(%arg0: i32) -> (i32, i32) {
    %c0_i32 = arith.constant 0 : i32
    %c0_i32_0 = arith.constant 0 : i32
    %c0_i32_1 = arith.constant 0 : i32
    return %c0_i32, %c0_i32_0 : i32, i32
  }
  func.func @transform_4(%arg0: i32) -> (i32, i32) {
    %c0_i32 = arith.constant 0 : i32
    %c0_i32_0 = arith.constant 0 : i32
    %c0_i32_1 = arith.constant 0 : i32
    return %c0_i32, %c0_i32_0 : i32, i32
  }
  func.func @transform_5(%arg0: i32) -> (i32, i32) {
    %c0_i32 = arith.constant 0 : i32
    %c0_i32_0 = arith.constant 0 : i32
    %c0_i32_1 = arith.constant 0 : i32
    return %c0_i32, %c0_i32_0 : i32, i32
  }
  func.func @transform_6(%arg0: i32) -> (i32, i32) {
    %c0_i32 = arith.constant 0 : i32
    %c0_i32_0 = arith.constant 0 : i32
    %c0_i32_1 = arith.constant 0 : i32
    return %c0_i32, %c0_i32_0 : i32, i32
  }
  func.func @transform_7(%arg0: i32) -> (i32, i32) {
    %c0_i32 = arith.constant 0 : i32
    %c0_i32_0 = arith.constant 0 : i32
    %c0_i32_1 = arith.constant 0 : i32
    return %c0_i32, %c0_i32_0 : i32, i32
  }
  func.func @transform_8(%arg0: i32) -> (i32, i32) {
    %c0_i32 = arith.constant 0 : i32
    %c0_i32_0 = arith.constant 0 : i32
    %c0_i32_1 = arith.constant 0 : i32
    return %c0_i32, %c0_i32_0 : i32, i32
  }
  func.func @transform_9(%arg0: i32) -> (i32, i32) {
    %c0_i32 = arith.constant 0 : i32
    %c0_i32_0 = arith.constant 0 : i32
    %c0_i32_1 = arith.constant 0 : i32
    return %c0_i32, %c0_i32_0 : i32, i32
  }
  func.func @transform_10(%arg0: i32) -> (i32, i32) {
    %c0_i32 = arith.constant 0 : i32
    %c0_i32_0 = arith.constant 0 : i32
    %c0_i32_1 = arith.constant 0 : i32
    return %c0_i32, %c0_i32_0 : i32, i32
  }
  func.func @transform_11(%arg0: i32) -> (i32, i32) {
    %c0_i32 = arith.constant 0 : i32
    %c0_i32_0 = arith.constant 0 : i32
    %c0_i32_1 = arith.constant 0 : i32
    return %c0_i32, %c0_i32_0 : i32, i32
  }
  func.func @transform_12(%arg0: i32) -> (i32, i32) {
    %c0_i32 = arith.constant 0 : i32
    %c0_i32_0 = arith.constant 0 : i32
    %c0_i32_1 = arith.constant 0 : i32
    return %c0_i32, %c0_i32_0 : i32, i32
  }
  func.func @transform_13(%arg0: i32) -> (i32, i32) {
    %c0_i32 = arith.constant 0 : i32
    %c0_i32_0 = arith.constant 0 : i32
    %c0_i32_1 = arith.constant 0 : i32
    return %c0_i32, %c0_i32_0 : i32, i32
  }
  func.func @transform_14(%arg0: i32) -> (i32, i32) {
    %c0_i32 = arith.constant 0 : i32
    %c0_i32_0 = arith.constant 0 : i32
    %c0_i32_1 = arith.constant 0 : i32
    return %c0_i32, %c0_i32_0 : i32, i32
  }
  func.func @transform_15(%arg0: i32) -> (i32, i32) {
    %c0_i32 = arith.constant 0 : i32
    %c0_i32_0 = arith.constant 0 : i32
    %c0_i32_1 = arith.constant 0 : i32
    return %c0_i32, %c0_i32_0 : i32, i32
  }
  func.func @transform_16(%arg0: i32) -> (i32, i32) {
    %c0_i32 = arith.constant 0 : i32
    %c0_i32_0 = arith.constant 0 : i32
    %c0_i32_1 = arith.constant 0 : i32
    return %c0_i32, %c0_i32_0 : i32, i32
  }
  func.func @transform_17(%arg0: i32) -> (i32, i32) {
    %c0_i32 = arith.constant 0 : i32
    %c0_i32_0 = arith.constant 0 : i32
    %c0_i32_1 = arith.constant 0 : i32
    return %c0_i32, %c0_i32_0 : i32, i32
  }
  func.func @transform_18(%arg0: i32) -> (i32, i32) {
    %c0_i32 = arith.constant 0 : i32
    %c0_i32_0 = arith.constant 0 : i32
    %c0_i32_1 = arith.constant 0 : i32
    return %c0_i32, %c0_i32_0 : i32, i32
  }
  func.func @transform_19(%arg0: i32) -> (i32, i32) {
    %c0_i32 = arith.constant 0 : i32
    %c0_i32_0 = arith.constant 0 : i32
    %c0_i32_1 = arith.constant 0 : i32
    return %c0_i32, %c0_i32_0 : i32, i32
  }
  func.func @transform_20(%arg0: i32) -> (i32, i32) {
    %c0_i32 = arith.constant 0 : i32
    %c0_i32_0 = arith.constant 0 : i32
    %c0_i32_1 = arith.constant 0 : i32
    return %c0_i32, %c0_i32_0 : i32, i32
  }
  func.func @transform_21(%arg0: i32) -> (i32, i32) {
    %c0_i32 = arith.constant 0 : i32
    %c0_i32_0 = arith.constant 0 : i32
    %c0_i32_1 = arith.constant 0 : i32
    return %c0_i32, %c0_i32_0 : i32, i32
  }
  func.func @transform_22(%arg0: i32) -> (i32, i32) {
    %c0_i32 = arith.constant 0 : i32
    %c0_i32_0 = arith.constant 0 : i32
    %c0_i32_1 = arith.constant 0 : i32
    return %c0_i32, %c0_i32_0 : i32, i32
  }
  func.func @transform_23(%arg0: i32) -> (i32, i32) {
    %c0_i32 = arith.constant 0 : i32
    %c0_i32_0 = arith.constant 0 : i32
    %c0_i32_1 = arith.constant 0 : i32
    return %c0_i32, %c0_i32_0 : i32, i32
  }
  func.func @transform_24(%arg0: i32) -> (i32, i32) {
    %c0_i32 = arith.constant 0 : i32
    %c0_i32_0 = arith.constant 0 : i32
    %c0_i32_1 = arith.constant 0 : i32
    return %c0_i32, %c0_i32_0 : i32, i32
  }
  func.func @transform_25(%arg0: i32) -> (i32, i32, i32) {
    %c0_i32 = arith.constant 0 : i32
    %c0_i32_0 = arith.constant 0 : i32
    %c0_i32_1 = arith.constant 0 : i32
    return %arg0, %c0_i32, %c0_i32_0 : i32, i32, i32
  }
}

</mosaic_0001>

<llo_original>
// kernel: resnet_combined_layers_features.1
$region0: #{resnet_combined_layers_features.1}
  #allocation0 [shape = 'u32[]', space=smem, size = 0x4, offset = 0x4, fixed_abs, tag = 'smem constant byte address 0x4 - core index']
  #allocation1 [shape = 'u32[144,128]{1,0:T(1,128)}', space=vmem, size = 0x12000, scoped, tag = 'internal scratch']
  %s0 = inlined_call_operand.vmem [shape: f32[2,16,4], index: 0, kind: input, shape index: {}]
  %s1 = inlined_call_operand.vmem [shape: f32[32,8], index: 1, kind: input, shape index: {}]
  %s2 = inlined_call_operand.vmem [shape: f32[1,8], index: 2, kind: input, shape index: {}]
  %s3 = inlined_call_operand.vmem [shape: f32[40,8], index: 3, kind: input, shape index: {}]
  %s4 = inlined_call_operand.vmem [shape: f32[1,8], index: 4, kind: input, shape index: {}]
  %s5 = inlined_call_operand.vmem [shape: f32[24,8], index: 5, kind: input, shape index: {}]
  %s6 = inlined_call_operand.vmem [shape: f32[1,8], index: 6, kind: input, shape index: {}]
  %s7 = inlined_call_operand.vmem [shape: f32[4,8], index: 7, kind: input, shape index: {}]
  %s8 = inlined_call_operand.vmem [shape: f32[1,8], index: 8, kind: input, shape index: {}]
  %s9 = inlined_call_operand.vmem [shape: f32[64,16], index: 9, kind: input, shape index: {}]
  %s10 = inlined_call_operand.vmem [shape: f32[1,16], index: 10, kind: input, shape index: {}]
  %s11 = inlined_call_operand.vmem [shape: f32[80,16], index: 11, kind: input, shape index: {}]
  %s12 = inlined_call_operand.vmem [shape: f32[1,16], index: 12, kind: input, shape index: {}]
  %s13 = inlined_call_operand.vmem [shape: f32[48,16], index: 13, kind: input, shape index: {}]
  %s14 = inlined_call_operand.vmem [shape: f32[1,16], index: 14, kind: input, shape index: {}]
  %s15 = inlined_call_operand.vmem [shape: f32[8,16], index: 15, kind: input, shape index: {}]
  %s16 = inlined_call_operand.vmem [shape: f32[1,16], index: 16, kind: input, shape index: {}]
  %s17 = inlined_call_operand.vmem [shape: f32[128,16], index: 17, kind: input, shape index: {}]
  %s18 = inlined_call_operand.vmem [shape: f32[1,16], index: 18, kind: input, shape index: {}]
  %s19 = inlined_call_operand.vmem [shape: f32[80,16], index: 19, kind: input, shape index: {}]
  %s20 = inlined_call_operand.vmem [shape: f32[1,16], index: 20, kind: input, shape index: {}]
  %s21 = inlined_call_operand.vmem [shape: f32[48,16], index: 21, kind: input, shape index: {}]
  %s22 = inlined_call_operand.vmem [shape: f32[1,16], index: 22, kind: input, shape index: {}]
  %s23 = inlined_call_operand.vmem [shape: f32[16,16], index: 23, kind: input, shape index: {}]
  %s24 = inlined_call_operand.vmem [shape: f32[1,16], index: 24, kind: input, shape index: {}]
  %s25 = inlined_call_operand.vmem [shape: f32[2,4,16], index: 25, kind: output, shape index: {}]
  %s26 = sld [smem:[#allocation0]]
  $region133: #{resnet_combined_layers_features.1} parent=0
    _
  %s28 = ssub.s32 1, %s26
  %s29 = scalar_select 0, %s28, %s26
  loop: start=0, step=1, limit=4
  $region2: #{resnet_combined_layers_features.1} parent=0 // loop_pre_header
    _
  $region3: #{resnet_combined_layers_features.1} parent=0 // loop_header
    %s31 = sphi 0, %s35
    %p32 = scmp.ge.s32.totalorder %s31, 4
    %s41 = sphi 0, %s43
    %s44 = sphi 0, %s41
    %s45 = sphi 0, %s44
    %s61 = sphi 0, %s45
    %s65 = sphi 0, %s65
    %s67 = sphi 0, %s65
    %s68 = sphi 0, %s67
    %s82 = sphi 0, %s68
    %s86 = sphi 0, %s86
    %s88 = sphi 0, %s86
    %s89 = sphi 0, %s88
    %s103 = sphi 0, %s89
    %s107 = sphi 0, %s107
    %s109 = sphi 0, %s107
    %s110 = sphi 0, %s109
    %s124 = sphi 0, %s110
    %s128 = sphi 0, %s128
    %s130 = sphi 0, %s128
    %s131 = sphi 0, %s130
    %s145 = sphi 0, %s131
    %s149 = sphi 0, %s149
    %s151 = sphi 0, %s149
    %s152 = sphi 0, %s151
    %s166 = sphi 0, %s152
    %s170 = sphi 0, %s170
    %s172 = sphi 0, %s170
    %s173 = sphi 0, %s172
    %s187 = sphi 0, %s173
    %s191 = sphi 0, %s191
    %s193 = sphi 0, %s191
    %s194 = sphi 0, %s193
    %s208 = sphi 0, %s194
    %s212 = sphi 0, %s212
    %s214 = sphi 0, %s212
    %s215 = sphi 0, %s214
    %s229 = sphi 0, %s215
    %s233 = sphi 0, %s233
    %s235 = sphi 0, %s233
    %s236 = sphi 0, %s235
    %s250 = sphi 0, %s236
    %s254 = sphi 0, %s254
    %s256 = sphi 0, %s254
    %s257 = sphi 0, %s256
    %s271 = sphi 0, %s257
    %s275 = sphi 0, %s275
    %s277 = sphi 0, %s275
    %s278 = sphi 0, %s277
    %s292 = sphi 0, %s278
    %s296 = sphi 0, %s296
    %s298 = sphi 0, %s296
    %s299 = sphi 0, %s298
    %s313 = sphi 0, %s299
    %s317 = sphi 0, %s317
    %s319 = sphi 0, %s317
    %s320 = sphi 0, %s319
    %s334 = sphi 0, %s320
    %s338 = sphi 0, %s338
    %s340 = sphi 0, %s338
    %s341 = sphi 0, %s340
    %s355 = sphi 0, %s341
    %s359 = sphi 0, %s359
    %s361 = sphi 0, %s359
    %s362 = sphi 0, %s361
    %s376 = sphi 0, %s362
    %s380 = sphi 0, %s380
    %s382 = sphi 0, %s380
    %s383 = sphi 0, %s382
    %s397 = sphi 0, %s383
    %s401 = sphi 0, %s401
    %s403 = sphi 0, %s401
    %s404 = sphi 0, %s403
    %s418 = sphi 0, %s404
    %s422 = sphi 0, %s422
    %s424 = sphi 0, %s422
    %s425 = sphi 0, %s424
    %s439 = sphi 0, %s425
    %s443 = sphi 0, %s443
    %s445 = sphi 0, %s443
    %s446 = sphi 0, %s445
    %s460 = sphi 0, %s446
    %s464 = sphi 0, %s464
    %s466 = sphi 0, %s464
    %s467 = sphi 0, %s466
    %s481 = sphi 0, %s467
    %s485 = sphi 0, %s485
    %s487 = sphi 0, %s485
    %s488 = sphi 0, %s487
    %s502 = sphi 0, %s488
    %s506 = sphi 0, %s506
    %s508 = sphi 0, %s506
    %s509 = sphi 0, %s508
    %s523 = sphi 0, %s509
    %s527 = sphi 0, %s527
    %s529 = sphi 0, %s527
    %s530 = sphi 0, %s529
    %s544 = sphi 0, %s530
    %s548 = sphi 0, %s548
    %s550 = sphi 0, %s548
    %s551 = sphi 0, %s550
    %s565 = sphi 0, %s551
    %s571 = sphi 0, %s573
    %s574 = sphi 0, %s571
    %s575 = sphi 0, %s574
    %s591 = sphi 0, %s575
  $region4: #{resnet_combined_layers_features.1} parent=0 // loop_header_branch
    %34 = sbr.rel (%p32) target = $region8
  $region5: #{resnet_combined_layers_features.1} parent=0 // loop_body
    %s36 = ssub.s32 %s31, 1
    %s37 = ssub.s32 %s31, 2
    %s38 = sadd.s32 %s31, 1
    %s39 = ssub.s32 %s31, %s38
    %p40 = scmp.eq.s32.totalorder %s39, 0
    %s42 = sadd.s32 %s41, 1
    %s43 = scalar_select %p40, %s41, %s42
    %p46 = pneg %p40
    %p47 = scmp.eq.s32.totalorder %s31, 1
    %p48 = por %p46, %p47
    %p49 = scmp.ne.s32.totalorder %s41, %s44
    %p50 = scmp.eq.s32.totalorder %s31, 0
    %p51 = por %p49, %p50
    %p52 = scmp.ne.s32.totalorder %s41, %s44
    %p53 = scmp.eq.s32.totalorder %s36, 1
    %p54 = por %p52, %p53
    %p55 = scmp.ne.s32.totalorder %s44, %s45
    %p56 = scmp.eq.s32.totalorder %s36, 0
    %p57 = por %p55, %p56
    %p58 = scmp.ne.s32.totalorder %s44, %s45
    %p59 = scmp.eq.s32.totalorder %s37, 1
    %p60 = por %p58, %p59
    %p62 = scmp.ne.s32.totalorder %s45, %s61
    %p63 = scmp.eq.s32.totalorder %s37, 0
    %p64 = por %p62, %p63
    %s66 = sadd.s32 %s65, 1
    %p69 = scmp.eq.s32.totalorder %s31, 1
    %p70 = scmp.ne.s32.totalorder %s65, %s67
    %p71 = scmp.eq.s32.totalorder %s31, 0
    %p72 = por %p70, %p71
    %p73 = scmp.ne.s32.totalorder %s65, %s67
    %p74 = scmp.eq.s32.totalorder %s36, 1
    %p75 = por %p73, %p74
    %p76 = scmp.ne.s32.totalorder %s67, %s68
    %p77 = scmp.eq.s32.totalorder %s36, 0
    %p78 = por %p76, %p77
    %p79 = scmp.ne.s32.totalorder %s67, %s68
    %p80 = scmp.eq.s32.totalorder %s37, 1
    %p81 = por %p79, %p80
    %p83 = scmp.ne.s32.totalorder %s68, %s82
    %p84 = scmp.eq.s32.totalorder %s37, 0
    %p85 = por %p83, %p84
    %s87 = sadd.s32 %s86, 1
    %p90 = scmp.eq.s32.totalorder %s31, 1
    %p91 = scmp.ne.s32.totalorder %s86, %s88
    %p92 = scmp.eq.s32.totalorder %s31, 0
    %p93 = por %p91, %p92
    %p94 = scmp.ne.s32.totalorder %s86, %s88
    %p95 = scmp.eq.s32.totalorder %s36, 1
    %p96 = por %p94, %p95
    %p97 = scmp.ne.s32.totalorder %s88, %s89
    %p98 = scmp.eq.s32.totalorder %s36, 0
    %p99 = por %p97, %p98
    %p100 = scmp.ne.s32.totalorder %s88, %s89
    %p101 = scmp.eq.s32.totalorder %s37, 1
    %p102 = por %p100, %p101
    %p104 = scmp.ne.s32.totalorder %s89, %s103
    %p105 = scmp.eq.s32.totalorder %s37, 0
    %p106 = por %p104, %p105
    %s108 = sadd.s32 %s107, 1
    %p111 = scmp.eq.s32.totalorder %s31, 1
    %p112 = scmp.ne.s32.totalorder %s107, %s109
    %p113 = scmp.eq.s32.totalorder %s31, 0
    %p114 = por %p112, %p113
    %p115 = scmp.ne.s32.totalorder %s107, %s109
    %p116 = scmp.eq.s32.totalorder %s36, 1
    %p117 = por %p115, %p116
    %p118 = scmp.ne.s32.totalorder %s109, %s110
    %p119 = scmp.eq.s32.totalorder %s36, 0
    %p120 = por %p118, %p119
    %p121 = scmp.ne.s32.totalorder %s109, %s110
    %p122 = scmp.eq.s32.totalorder %s37, 1
    %p123 = por %p121, %p122
    %p125 = scmp.ne.s32.totalorder %s110, %s124
    %p126 = scmp.eq.s32.totalorder %s37, 0
    %p127 = por %p125, %p126
    %s129 = sadd.s32 %s128, 1
    %p132 = scmp.eq.s32.totalorder %s31, 1
    %p133 = scmp.ne.s32.totalorder %s128, %s130
    %p134 = scmp.eq.s32.totalorder %s31, 0
    %p135 = por %p133, %p134
    %p136 = scmp.ne.s32.totalorder %s128, %s130
    %p137 = scmp.eq.s32.totalorder %s36, 1
    %p138 = por %p136, %p137
    %p139 = scmp.ne.s32.totalorder %s130, %s131
    %p140 = scmp.eq.s32.totalorder %s36, 0
    %p141 = por %p139, %p140
    %p142 = scmp.ne.s32.totalorder %s130, %s131
    %p143 = scmp.eq.s32.totalorder %s37, 1
    %p144 = por %p142, %p143
    %p146 = scmp.ne.s32.totalorder %s131, %s145
    %p147 = scmp.eq.s32.totalorder %s37, 0
    %p148 = por %p146, %p147
    %s150 = sadd.s32 %s149, 1
    %p153 = scmp.eq.s32.totalorder %s31, 1
    %p154 = scmp.ne.s32.totalorder %s149, %s151
    %p155 = scmp.eq.s32.totalorder %s31, 0
    %p156 = por %p154, %p155
    %p157 = scmp.ne.s32.totalorder %s149, %s151
    %p158 = scmp.eq.s32.totalorder %s36, 1
    %p159 = por %p157, %p158
    %p160 = scmp.ne.s32.totalorder %s151, %s152
    %p161 = scmp.eq.s32.totalorder %s36, 0
    %p162 = por %p160, %p161
    %p163 = scmp.ne.s32.totalorder %s151, %s152
    %p164 = scmp.eq.s32.totalorder %s37, 1
    %p165 = por %p163, %p164
    %p167 = scmp.ne.s32.totalorder %s152, %s166
    %p168 = scmp.eq.s32.totalorder %s37, 0
    %p169 = por %p167, %p168
    %s171 = sadd.s32 %s170, 1
    %p174 = scmp.eq.s32.totalorder %s31, 1
    %p175 = scmp.ne.s32.totalorder %s170, %s172
    %p176 = scmp.eq.s32.totalorder %s31, 0
    %p177 = por %p175, %p176
    %p178 = scmp.ne.s32.totalorder %s170, %s172
    %p179 = scmp.eq.s32.totalorder %s36, 1
    %p180 = por %p178, %p179
    %p181 = scmp.ne.s32.totalorder %s172, %s173
    %p182 = scmp.eq.s32.totalorder %s36, 0
    %p183 = por %p181, %p182
    %p184 = scmp.ne.s32.totalorder %s172, %s173
    %p185 = scmp.eq.s32.totalorder %s37, 1
    %p186 = por %p184, %p185
    %p188 = scmp.ne.s32.totalorder %s173, %s187
    %p189 = scmp.eq.s32.totalorder %s37, 0
    %p190 = por %p188, %p189
    %s192 = sadd.s32 %s191, 1
    %p195 = scmp.eq.s32.totalorder %s31, 1
    %p196 = scmp.ne.s32.totalorder %s191, %s193
    %p197 = scmp.eq.s32.totalorder %s31, 0
    %p198 = por %p196, %p197
    %p199 = scmp.ne.s32.totalorder %s191, %s193
    %p200 = scmp.eq.s32.totalorder %s36, 1
    %p201 = por %p199, %p200
    %p202 = scmp.ne.s32.totalorder %s193, %s194
    %p203 = scmp.eq.s32.totalorder %s36, 0
    %p204 = por %p202, %p203
    %p205 = scmp.ne.s32.totalorder %s193, %s194
    %p206 = scmp.eq.s32.totalorder %s37, 1
    %p207 = por %p205, %p206
    %p209 = scmp.ne.s32.totalorder %s194, %s208
    %p210 = scmp.eq.s32.totalorder %s37, 0
    %p211 = por %p209, %p210
    %s213 = sadd.s32 %s212, 1
    %p216 = scmp.eq.s32.totalorder %s31, 1
    %p217 = scmp.ne.s32.totalorder %s212, %s214
    %p218 = scmp.eq.s32.totalorder %s31, 0
    %p219 = por %p217, %p218
    %p220 = scmp.ne.s32.totalorder %s212, %s214
    %p221 = scmp.eq.s32.totalorder %s36, 1
    %p222 = por %p220, %p221
    %p223 = scmp.ne.s32.totalorder %s214, %s215
    %p224 = scmp.eq.s32.totalorder %s36, 0
    %p225 = por %p223, %p224
    %p226 = scmp.ne.s32.totalorder %s214, %s215
    %p227 = scmp.eq.s32.totalorder %s37, 1
    %p228 = por %p226, %p227
    %p230 = scmp.ne.s32.totalorder %s215, %s229
    %p231 = scmp.eq.s32.totalorder %s37, 0
    %p232 = por %p230, %p231
    %s234 = sadd.s32 %s233, 1
    %p237 = scmp.eq.s32.totalorder %s31, 1
    %p238 = scmp.ne.s32.totalorder %s233, %s235
    %p239 = scmp.eq.s32.totalorder %s31, 0
    %p240 = por %p238, %p239
    %p241 = scmp.ne.s32.totalorder %s233, %s235
    %p242 = scmp.eq.s32.totalorder %s36, 1
    %p243 = por %p241, %p242
    %p244 = scmp.ne.s32.totalorder %s235, %s236
    %p245 = scmp.eq.s32.totalorder %s36, 0
    %p246 = por %p244, %p245
    %p247 = scmp.ne.s32.totalorder %s235, %s236
    %p248 = scmp.eq.s32.totalorder %s37, 1
    %p249 = por %p247, %p248
    %p251 = scmp.ne.s32.totalorder %s236, %s250
    %p252 = scmp.eq.s32.totalorder %s37, 0
    %p253 = por %p251, %p252
    %s255 = sadd.s32 %s254, 1
    %p258 = scmp.eq.s32.totalorder %s31, 1
    %p259 = scmp.ne.s32.totalorder %s254, %s256
    %p260 = scmp.eq.s32.totalorder %s31, 0
    %p261 = por %p259, %p260
    %p262 = scmp.ne.s32.totalorder %s254, %s256
    %p263 = scmp.eq.s32.totalorder %s36, 1
    %p264 = por %p262, %p263
    %p265 = scmp.ne.s32.totalorder %s256, %s257
    %p266 = scmp.eq.s32.totalorder %s36, 0
    %p267 = por %p265, %p266
    %p268 = scmp.ne.s32.totalorder %s256, %s257
    %p269 = scmp.eq.s32.totalorder %s37, 1
    %p270 = por %p268, %p269
    %p272 = scmp.ne.s32.totalorder %s257, %s271
    %p273 = scmp.eq.s32.totalorder %s37, 0
    %p274 = por %p272, %p273
    %s276 = sadd.s32 %s275, 1
    %p279 = scmp.eq.s32.totalorder %s31, 1
    %p280 = scmp.ne.s32.totalorder %s275, %s277
    %p281 = scmp.eq.s32.totalorder %s31, 0
    %p282 = por %p280, %p281
    %p283 = scmp.ne.s32.totalorder %s275, %s277
    %p284 = scmp.eq.s32.totalorder %s36, 1
    %p285 = por %p283, %p284
    %p286 = scmp.ne.s32.totalorder %s277, %s278
    %p287 = scmp.eq.s32.totalorder %s36, 0
    %p288 = por %p286, %p287
    %p289 = scmp.ne.s32.totalorder %s277, %s278
    %p290 = scmp.eq.s32.totalorder %s37, 1
    %p291 = por %p289, %p290
    %p293 = scmp.ne.s32.totalorder %s278, %s292
    %p294 = scmp.eq.s32.totalorder %s37, 0
    %p295 = por %p293, %p294
    %s297 = sadd.s32 %s296, 1
    %p300 = scmp.eq.s32.totalorder %s31, 1
    %p301 = scmp.ne.s32.totalorder %s296, %s298
    %p302 = scmp.eq.s32.totalorder %s31, 0
    %p303 = por %p301, %p302
    %p304 = scmp.ne.s32.totalorder %s296, %s298
    %p305 = scmp.eq.s32.totalorder %s36, 1
    %p306 = por %p304, %p305
    %p307 = scmp.ne.s32.totalorder %s298, %s299
    %p308 = scmp.eq.s32.totalorder %s36, 0
    %p309 = por %p307, %p308
    %p310 = scmp.ne.s32.totalorder %s298, %s299
    %p311 = scmp.eq.s32.totalorder %s37, 1
    %p312 = por %p310, %p311
    %p314 = scmp.ne.s32.totalorder %s299, %s313
    %p315 = scmp.eq.s32.totalorder %s37, 0
    %p316 = por %p314, %p315
    %s318 = sadd.s32 %s317, 1
    %p321 = scmp.eq.s32.totalorder %s31, 1
    %p322 = scmp.ne.s32.totalorder %s317, %s319
    %p323 = scmp.eq.s32.totalorder %s31, 0
    %p324 = por %p322, %p323
    %p325 = scmp.ne.s32.totalorder %s317, %s319
    %p326 = scmp.eq.s32.totalorder %s36, 1
    %p327 = por %p325, %p326
    %p328 = scmp.ne.s32.totalorder %s319, %s320
    %p329 = scmp.eq.s32.totalorder %s36, 0
    %p330 = por %p328, %p329
    %p331 = scmp.ne.s32.totalorder %s319, %s320
    %p332 = scmp.eq.s32.totalorder %s37, 1
    %p333 = por %p331, %p332
    %p335 = scmp.ne.s32.totalorder %s320, %s334
    %p336 = scmp.eq.s32.totalorder %s37, 0
    %p337 = por %p335, %p336
    %s339 = sadd.s32 %s338, 1
    %p342 = scmp.eq.s32.totalorder %s31, 1
    %p343 = scmp.ne.s32.totalorder %s338, %s340
    %p344 = scmp.eq.s32.totalorder %s31, 0
    %p345 = por %p343, %p344
    %p346 = scmp.ne.s32.totalorder %s338, %s340
    %p347 = scmp.eq.s32.totalorder %s36, 1
    %p348 = por %p346, %p347
    %p349 = scmp.ne.s32.totalorder %s340, %s341
    %p350 = scmp.eq.s32.totalorder %s36, 0
    %p351 = por %p349, %p350
    %p352 = scmp.ne.s32.totalorder %s340, %s341
    %p353 = scmp.eq.s32.totalorder %s37, 1
    %p354 = por %p352, %p353
    %p356 = scmp.ne.s32.totalorder %s341, %s355
    %p357 = scmp.eq.s32.totalorder %s37, 0
    %p358 = por %p356, %p357
    %s360 = sadd.s32 %s359, 1
    %p363 = scmp.eq.s32.totalorder %s31, 1
    %p364 = scmp.ne.s32.totalorder %s359, %s361
    %p365 = scmp.eq.s32.totalorder %s31, 0
    %p366 = por %p364, %p365
    %p367 = scmp.ne.s32.totalorder %s359, %s361
    %p368 = scmp.eq.s32.totalorder %s36, 1
    %p369 = por %p367, %p368
    %p370 = scmp.ne.s32.totalorder %s361, %s362
    %p371 = scmp.eq.s32.totalorder %s36, 0
    %p372 = por %p370, %p371
    %p373 = scmp.ne.s32.totalorder %s361, %s362
    %p374 = scmp.eq.s32.totalorder %s37, 1
    %p375 = por %p373, %p374
    %p377 = scmp.ne.s32.totalorder %s362, %s376
    %p378 = scmp.eq.s32.totalorder %s37, 0
    %p379 = por %p377, %p378
    %s381 = sadd.s32 %s380, 1
    %p384 = scmp.eq.s32.totalorder %s31, 1
    %p385 = scmp.ne.s32.totalorder %s380, %s382
    %p386 = scmp.eq.s32.totalorder %s31, 0
    %p387 = por %p385, %p386
    %p388 = scmp.ne.s32.totalorder %s380, %s382
    %p389 = scmp.eq.s32.totalorder %s36, 1
    %p390 = por %p388, %p389
    %p391 = scmp.ne.s32.totalorder %s382, %s383
    %p392 = scmp.eq.s32.totalorder %s36, 0
    %p393 = por %p391, %p392
    %p394 = scmp.ne.s32.totalorder %s382, %s383
    %p395 = scmp.eq.s32.totalorder %s37, 1
    %p396 = por %p394, %p395
    %p398 = scmp.ne.s32.totalorder %s383, %s397
    %p399 = scmp.eq.s32.totalorder %s37, 0
    %p400 = por %p398, %p399
    %s402 = sadd.s32 %s401, 1
    %p405 = scmp.eq.s32.totalorder %s31, 1
    %p406 = scmp.ne.s32.totalorder %s401, %s403
    %p407 = scmp.eq.s32.totalorder %s31, 0
    %p408 = por %p406, %p407
    %p409 = scmp.ne.s32.totalorder %s401, %s403
    %p410 = scmp.eq.s32.totalorder %s36, 1
    %p411 = por %p409, %p410
    %p412 = scmp.ne.s32.totalorder %s403, %s404
    %p413 = scmp.eq.s32.totalorder %s36, 0
    %p414 = por %p412, %p413
    %p415 = scmp.ne.s32.totalorder %s403, %s404
    %p416 = scmp.eq.s32.totalorder %s37, 1
    %p417 = por %p415, %p416
    %p419 = scmp.ne.s32.totalorder %s404, %s418
    %p420 = scmp.eq.s32.totalorder %s37, 0
    %p421 = por %p419, %p420
    %s423 = sadd.s32 %s422, 1
    %p426 = scmp.eq.s32.totalorder %s31, 1
    %p427 = scmp.ne.s32.totalorder %s422, %s424
    %p428 = scmp.eq.s32.totalorder %s31, 0
    %p429 = por %p427, %p428
    %p430 = scmp.ne.s32.totalorder %s422, %s424
    %p431 = scmp.eq.s32.totalorder %s36, 1
    %p432 = por %p430, %p431
    %p433 = scmp.ne.s32.totalorder %s424, %s425
    %p434 = scmp.eq.s32.totalorder %s36, 0
    %p435 = por %p433, %p434
    %p436 = scmp.ne.s32.totalorder %s424, %s425
    %p437 = scmp.eq.s32.totalorder %s37, 1
    %p438 = por %p436, %p437
    %p440 = scmp.ne.s32.totalorder %s425, %s439
    %p441 = scmp.eq.s32.totalorder %s37, 0
    %p442 = por %p440, %p441
    %s444 = sadd.s32 %s443, 1
    %p447 = scmp.eq.s32.totalorder %s31, 1
    %p448 = scmp.ne.s32.totalorder %s443, %s445
    %p449 = scmp.eq.s32.totalorder %s31, 0
    %p450 = por %p448, %p449
    %p451 = scmp.ne.s32.totalorder %s443, %s445
    %p452 = scmp.eq.s32.totalorder %s36, 1
    %p453 = por %p451, %p452
    %p454 = scmp.ne.s32.totalorder %s445, %s446
    %p455 = scmp.eq.s32.totalorder %s36, 0
    %p456 = por %p454, %p455
    %p457 = scmp.ne.s32.totalorder %s445, %s446
    %p458 = scmp.eq.s32.totalorder %s37, 1
    %p459 = por %p457, %p458
    %p461 = scmp.ne.s32.totalorder %s446, %s460
    %p462 = scmp.eq.s32.totalorder %s37, 0
    %p463 = por %p461, %p462
    %s465 = sadd.s32 %s464, 1
    %p468 = scmp.eq.s32.totalorder %s31, 1
    %p469 = scmp.ne.s32.totalorder %s464, %s466
    %p470 = scmp.eq.s32.totalorder %s31, 0
    %p471 = por %p469, %p470
    %p472 = scmp.ne.s32.totalorder %s464, %s466
    %p473 = scmp.eq.s32.totalorder %s36, 1
    %p474 = por %p472, %p473
    %p475 = scmp.ne.s32.totalorder %s466, %s467
    %p476 = scmp.eq.s32.totalorder %s36, 0
    %p477 = por %p475, %p476
    %p478 = scmp.ne.s32.totalorder %s466, %s467
    %p479 = scmp.eq.s32.totalorder %s37, 1
    %p480 = por %p478, %p479
    %p482 = scmp.ne.s32.totalorder %s467, %s481
    %p483 = scmp.eq.s32.totalorder %s37, 0
    %p484 = por %p482, %p483
    %s486 = sadd.s32 %s485, 1
    %p489 = scmp.eq.s32.totalorder %s31, 1
    %p490 = scmp.ne.s32.totalorder %s485, %s487
    %p491 = scmp.eq.s32.totalorder %s31, 0
    %p492 = por %p490, %p491
    %p493 = scmp.ne.s32.totalorder %s485, %s487
    %p494 = scmp.eq.s32.totalorder %s36, 1
    %p495 = por %p493, %p494
    %p496 = scmp.ne.s32.totalorder %s487, %s488
    %p497 = scmp.eq.s32.totalorder %s36, 0
    %p498 = por %p496, %p497
    %p499 = scmp.ne.s32.totalorder %s487, %s488
    %p500 = scmp.eq.s32.totalorder %s37, 1
    %p501 = por %p499, %p500
    %p503 = scmp.ne.s32.totalorder %s488, %s502
    %p504 = scmp.eq.s32.totalorder %s37, 0
    %p505 = por %p503, %p504
    %s507 = sadd.s32 %s506, 1
    %p510 = scmp.eq.s32.totalorder %s31, 1
    %p511 = scmp.ne.s32.totalorder %s506, %s508
    %p512 = scmp.eq.s32.totalorder %s31, 0
    %p513 = por %p511, %p512
    %p514 = scmp.ne.s32.totalorder %s506, %s508
    %p515 = scmp.eq.s32.totalorder %s36, 1
    %p516 = por %p514, %p515
    %p517 = scmp.ne.s32.totalorder %s508, %s509
    %p518 = scmp.eq.s32.totalorder %s36, 0
    %p519 = por %p517, %p518
    %p520 = scmp.ne.s32.totalorder %s508, %s509
    %p521 = scmp.eq.s32.totalorder %s37, 1
    %p522 = por %p520, %p521
    %p524 = scmp.ne.s32.totalorder %s509, %s523
    %p525 = scmp.eq.s32.totalorder %s37, 0
    %p526 = por %p524, %p525
    %s528 = sadd.s32 %s527, 1
    %p531 = scmp.eq.s32.totalorder %s31, 1
    %p532 = scmp.ne.s32.totalorder %s527, %s529
    %p533 = scmp.eq.s32.totalorder %s31, 0
    %p534 = por %p532, %p533
    %p535 = scmp.ne.s32.totalorder %s527, %s529
    %p536 = scmp.eq.s32.totalorder %s36, 1
    %p537 = por %p535, %p536
    %p538 = scmp.ne.s32.totalorder %s529, %s530
    %p539 = scmp.eq.s32.totalorder %s36, 0
    %p540 = por %p538, %p539
    %p541 = scmp.ne.s32.totalorder %s529, %s530
    %p542 = scmp.eq.s32.totalorder %s37, 1
    %p543 = por %p541, %p542
    %p545 = scmp.ne.s32.totalorder %s530, %s544
    %p546 = scmp.eq.s32.totalorder %s37, 0
    %p547 = por %p545, %p546
    %s549 = sadd.s32 %s548, 1
    %p552 = scmp.eq.s32.totalorder %s31, 1
    %p553 = scmp.ne.s32.totalorder %s548, %s550
    %p554 = scmp.eq.s32.totalorder %s31, 0
    %p555 = por %p553, %p554
    %p556 = scmp.ne.s32.totalorder %s548, %s550
    %p557 = scmp.eq.s32.totalorder %s36, 1
    %p558 = por %p556, %p557
    %p559 = scmp.ne.s32.totalorder %s550, %s551
    %p560 = scmp.eq.s32.totalorder %s36, 0
    %p561 = por %p559, %p560
    %p562 = scmp.ne.s32.totalorder %s550, %s551
    %p563 = scmp.eq.s32.totalorder %s37, 1
    %p564 = por %p562, %p563
    %p566 = scmp.ne.s32.totalorder %s551, %s565
    %p567 = scmp.eq.s32.totalorder %s37, 0
    %p568 = por %p566, %p567
    %s569 = ssub.s32 %s31, %s38
    %p570 = scmp.eq.s32.totalorder %s569, 0
    %s572 = sadd.s32 %s571, 1
    %s573 = scalar_select %p570, %s571, %s572
    %p576 = pneg %p570
    %p577 = scmp.eq.s32.totalorder %s31, 1
    %p578 = por %p576, %p577
    %p579 = scmp.ne.s32.totalorder %s571, %s574
    %p580 = scmp.eq.s32.totalorder %s31, 0
    %p581 = por %p579, %p580
    %p582 = scmp.ne.s32.totalorder %s571, %s574
    %p583 = scmp.eq.s32.totalorder %s36, 1
    %p584 = por %p582, %p583
    %p585 = scmp.ne.s32.totalorder %s574, %s575
    %p586 = scmp.eq.s32.totalorder %s36, 0
    %p587 = por %p585, %p586
    %p588 = scmp.ne.s32.totalorder %s574, %s575
    %p589 = scmp.eq.s32.totalorder %s37, 1
    %p590 = por %p588, %p589
    %p592 = scmp.ne.s32.totalorder %s575, %s591
    %p593 = scmp.eq.s32.totalorder %s37, 0
    %p594 = por %p592, %p593
    %p595 = scmp.le.s32.totalorder 1, %s31
    %p596 = scmp.lt.s32.totalorder %s31, 3
    %p597 = pnand %p595, %p596
    %p598 = pneg %p597
    // Predicated region
    $region9: #{resnet_combined_layers_features.1} parent=5 // pred_check
      _
    $region10: #{resnet_combined_layers_features.1} parent=5 // pred_check_branch
      %600 = sbr.rel (%p597) target = $region12
    $region11: #{resnet_combined_layers_features.1} parent=5 // pred_region
      %s601 = ssub.s32 %s31, 1
      // Predicated region
      $region13: #{resnet_combined_layers_features.1} parent=11 // pred_check
        %p602 = pneg %p78
      $region14: #{resnet_combined_layers_features.1} parent=11 // pred_check_branch
        %604 = sbr.rel (%p602) target = $region16
      $region15: #{resnet_combined_layers_features.1} parent=11 // pred_region
        _
      $region16: #{resnet_combined_layers_features.1} parent=11 // pred_fallthru
        _
      // Predicated region
      $region17: #{resnet_combined_layers_features.1} parent=11 // pred_check
        %p605 = pneg %p99
      $region18: #{resnet_combined_layers_features.1} parent=11 // pred_check_branch
        %607 = sbr.rel (%p605) target = $region20
      $region19: #{resnet_combined_layers_features.1} parent=11 // pred_region
        _
      $region20: #{resnet_combined_layers_features.1} parent=11 // pred_fallthru
        _
      // Predicated region
      $region21: #{resnet_combined_layers_features.1} parent=11 // pred_check
        %p608 = pneg %p120
      $region22: #{resnet_combined_layers_features.1} parent=11 // pred_check_branch
        %610 = sbr.rel (%p608) target = $region24
      $region23: #{resnet_combined_layers_features.1} parent=11 // pred_region
        _
      $region24: #{resnet_combined_layers_features.1} parent=11 // pred_fallthru
        _
      // Predicated region
      $region25: #{resnet_combined_layers_features.1} parent=11 // pred_check
        %p611 = pneg %p141
      $region26: #{resnet_combined_layers_features.1} parent=11 // pred_check_branch
        %613 = sbr.rel (%p611) target = $region28
      $region27: #{resnet_combined_layers_features.1} parent=11 // pred_region
        _
      $region28: #{resnet_combined_layers_features.1} parent=11 // pred_fallthru
        _
      // Predicated region
      $region29: #{resnet_combined_layers_features.1} parent=11 // pred_check
        %p614 = pneg %p162
      $region30: #{resnet_combined_layers_features.1} parent=11 // pred_check_branch
        %616 = sbr.rel (%p614) target = $region32
      $region31: #{resnet_combined_layers_features.1} parent=11 // pred_region
        _
      $region32: #{resnet_combined_layers_features.1} parent=11 // pred_fallthru
        _
      // Predicated region
      $region33: #{resnet_combined_layers_features.1} parent=11 // pred_check
        %p617 = pneg %p183
      $region34: #{resnet_combined_layers_features.1} parent=11 // pred_check_branch
        %619 = sbr.rel (%p617) target = $region36
      $region35: #{resnet_combined_layers_features.1} parent=11 // pred_region
        _
      $region36: #{resnet_combined_layers_features.1} parent=11 // pred_fallthru
        _
      // Predicated region
      $region37: #{resnet_combined_layers_features.1} parent=11 // pred_check
        %p620 = pneg %p204
      $region38: #{resnet_combined_layers_features.1} parent=11 // pred_check_branch
        %622 = sbr.rel (%p620) target = $region40
      $region39: #{resnet_combined_layers_features.1} parent=11 // pred_region
        _
      $region40: #{resnet_combined_layers_features.1} parent=11 // pred_fallthru
        _
      // Predicated region
      $region41: #{resnet_combined_layers_features.1} parent=11 // pred_check
        %p623 = pneg %p225
      $region42: #{resnet_combined_layers_features.1} parent=11 // pred_check_branch
        %625 = sbr.rel (%p623) target = $region44
      $region43: #{resnet_combined_layers_features.1} parent=11 // pred_region
        _
      $region44: #{resnet_combined_layers_features.1} parent=11 // pred_fallthru
        _
      // Predicated region
      $region45: #{resnet_combined_layers_features.1} parent=11 // pred_check
        %p626 = pneg %p246
      $region46: #{resnet_combined_layers_features.1} parent=11 // pred_check_branch
        %628 = sbr.rel (%p626) target = $region48
      $region47: #{resnet_combined_layers_features.1} parent=11 // pred_region
        _
      $region48: #{resnet_combined_layers_features.1} parent=11 // pred_fallthru
        _
      // Predicated region
      $region49: #{resnet_combined_layers_features.1} parent=11 // pred_check
        %p629 = pneg %p267
      $region50: #{resnet_combined_layers_features.1} parent=11 // pred_check_branch
        %631 = sbr.rel (%p629) target = $region52
      $region51: #{resnet_combined_layers_features.1} parent=11 // pred_region
        _
      $region52: #{resnet_combined_layers_features.1} parent=11 // pred_fallthru
        _
      // Predicated region
      $region53: #{resnet_combined_layers_features.1} parent=11 // pred_check
        %p632 = pneg %p288
      $region54: #{resnet_combined_layers_features.1} parent=11 // pred_check_branch
        %634 = sbr.rel (%p632) target = $region56
      $region55: #{resnet_combined_layers_features.1} parent=11 // pred_region
        _
      $region56: #{resnet_combined_layers_features.1} parent=11 // pred_fallthru
        _
      // Predicated region
      $region57: #{resnet_combined_layers_features.1} parent=11 // pred_check
        %p635 = pneg %p309
      $region58: #{resnet_combined_layers_features.1} parent=11 // pred_check_branch
        %637 = sbr.rel (%p635) target = $region60
      $region59: #{resnet_combined_layers_features.1} parent=11 // pred_region
        _
      $region60: #{resnet_combined_layers_features.1} parent=11 // pred_fallthru
        _
      // Predicated region
      $region61: #{resnet_combined_layers_features.1} parent=11 // pred_check
        %p638 = pneg %p330
      $region62: #{resnet_combined_layers_features.1} parent=11 // pred_check_branch
        %640 = sbr.rel (%p638) target = $region64
      $region63: #{resnet_combined_layers_features.1} parent=11 // pred_region
        _
      $region64: #{resnet_combined_layers_features.1} parent=11 // pred_fallthru
        _
      // Predicated region
      $region65: #{resnet_combined_layers_features.1} parent=11 // pred_check
        %p641 = pneg %p351
      $region66: #{resnet_combined_layers_features.1} parent=11 // pred_check_branch
        %643 = sbr.rel (%p641) target = $region68
      $region67: #{resnet_combined_layers_features.1} parent=11 // pred_region
        _
      $region68: #{resnet_combined_layers_features.1} parent=11 // pred_fallthru
        _
      // Predicated region
      $region69: #{resnet_combined_layers_features.1} parent=11 // pred_check
        %p644 = pneg %p372
      $region70: #{resnet_combined_layers_features.1} parent=11 // pred_check_branch
        %646 = sbr.rel (%p644) target = $region72
      $region71: #{resnet_combined_layers_features.1} parent=11 // pred_region
        _
      $region72: #{resnet_combined_layers_features.1} parent=11 // pred_fallthru
        _
      // Predicated region
      $region73: #{resnet_combined_layers_features.1} parent=11 // pred_check
        %p647 = pneg %p393
      $region74: #{resnet_combined_layers_features.1} parent=11 // pred_check_branch
        %649 = sbr.rel (%p647) target = $region76
      $region75: #{resnet_combined_layers_features.1} parent=11 // pred_region
        _
      $region76: #{resnet_combined_layers_features.1} parent=11 // pred_fallthru
        _
      // Predicated region
      $region77: #{resnet_combined_layers_features.1} parent=11 // pred_check
        %p650 = pneg %p414
      $region78: #{resnet_combined_layers_features.1} parent=11 // pred_check_branch
        %652 = sbr.rel (%p650) target = $region80
      $region79: #{resnet_combined_layers_features.1} parent=11 // pred_region
        _
      $region80: #{resnet_combined_layers_features.1} parent=11 // pred_fallthru
        _
      // Predicated region
      $region81: #{resnet_combined_layers_features.1} parent=11 // pred_check
        %p653 = pneg %p435
      $region82: #{resnet_combined_layers_features.1} parent=11 // pred_check_branch
        %655 = sbr.rel (%p653) target = $region84
      $region83: #{resnet_combined_layers_features.1} parent=11 // pred_region
        _
      $region84: #{resnet_combined_layers_features.1} parent=11 // pred_fallthru
        _
      // Predicated region
      $region85: #{resnet_combined_layers_features.1} parent=11 // pred_check
        %p656 = pneg %p456
      $region86: #{resnet_combined_layers_features.1} parent=11 // pred_check_branch
        %658 = sbr.rel (%p656) target = $region88
      $region87: #{resnet_combined_layers_features.1} parent=11 // pred_region
        _
      $region88: #{resnet_combined_layers_features.1} parent=11 // pred_fallthru
        _
      // Predicated region
      $region89: #{resnet_combined_layers_features.1} parent=11 // pred_check
        %p659 = pneg %p477
      $region90: #{resnet_combined_layers_features.1} parent=11 // pred_check_branch
        %661 = sbr.rel (%p659) target = $region92
      $region91: #{resnet_combined_layers_features.1} parent=11 // pred_region
        _
      $region92: #{resnet_combined_layers_features.1} parent=11 // pred_fallthru
        _
      // Predicated region
      $region93: #{resnet_combined_layers_features.1} parent=11 // pred_check
        %p662 = pneg %p498
      $region94: #{resnet_combined_layers_features.1} parent=11 // pred_check_branch
        %664 = sbr.rel (%p662) target = $region96
      $region95: #{resnet_combined_layers_features.1} parent=11 // pred_region
        _
      $region96: #{resnet_combined_layers_features.1} parent=11 // pred_fallthru
        _
      // Predicated region
      $region97: #{resnet_combined_layers_features.1} parent=11 // pred_check
        %p665 = pneg %p519
      $region98: #{resnet_combined_layers_features.1} parent=11 // pred_check_branch
        %667 = sbr.rel (%p665) target = $region100
      $region99: #{resnet_combined_layers_features.1} parent=11 // pred_region
        _
      $region100: #{resnet_combined_layers_features.1} parent=11 // pred_fallthru
        _
      // Predicated region
      $region101: #{resnet_combined_layers_features.1} parent=11 // pred_check
        %p668 = pneg %p540
      $region102: #{resnet_combined_layers_features.1} parent=11 // pred_check_branch
        %670 = sbr.rel (%p668) target = $region104
      $region103: #{resnet_combined_layers_features.1} parent=11 // pred_region
        _
      $region104: #{resnet_combined_layers_features.1} parent=11 // pred_fallthru
        _
      // Predicated region
      $region105: #{resnet_combined_layers_features.1} parent=11 // pred_check
        %p671 = pneg %p561
      $region106: #{resnet_combined_layers_features.1} parent=11 // pred_check_branch
        %673 = sbr.rel (%p671) target = $region108
      $region107: #{resnet_combined_layers_features.1} parent=11 // pred_region
        _
      $region108: #{resnet_combined_layers_features.1} parent=11 // pred_fallthru
        _
    $region12: #{resnet_combined_layers_features.1} parent=5 // pred_fallthru
      _
    %p674 = scmp.lt.s32.totalorder %s31, 2
    // Predicated region
    $region109: #{resnet_combined_layers_features.1} parent=5 // pred_check
      %p675 = pneg %p674
    $region110: #{resnet_combined_layers_features.1} parent=5 // pred_check_branch
      %677 = sbr.rel (%p675) target = $region112
    $region111: #{resnet_combined_layers_features.1} parent=5 // pred_region
      // Predicated region
      $region113: #{resnet_combined_layers_features.1} parent=111 // pred_check
        %p678 = pneg %p51
      $region114: #{resnet_combined_layers_features.1} parent=111 // pred_check_branch
        %680 = sbr.rel (%p678) target = $region116
      $region115: #{resnet_combined_layers_features.1} parent=111 // pred_region
        %p681 = scmp.lt.s32.totalorder %s31, 1
        %s682 = scalar_select %p681, %s31, 1
        %s683 = smul.addr %s682, 2
        %s684 = smul.addr %s683, 8
        %s685 = scalar_lea.vmem %s0, %s684
      $region116: #{resnet_combined_layers_features.1} parent=111 // pred_fallthru
        _
    $region112: #{resnet_combined_layers_features.1} parent=5 // pred_fallthru
      _
    %p686 = scmp.le.s32.totalorder 1, %s31
    %p687 = scmp.lt.s32.totalorder %s31, 3
    %p688 = pnand %p686, %p687
    %p689 = pneg %p688
    // Predicated region
    $region117: #{resnet_combined_layers_features.1} parent=5 // pred_check
      _
    $region118: #{resnet_combined_layers_features.1} parent=5 // pred_check_branch
      %691 = sbr.rel (%p688) target = $region120
    $region119: #{resnet_combined_layers_features.1} parent=5 // pred_region
      %s692 = ssub.s32 %s31, 1
      %p693 = scmp.lt.s32.totalorder %s36, 1
      %s694 = scalar_select %p693, %s36, 1
      %s695 = smul.addr %s694, 2
      %s696 = smul.addr %s695, 8
      %s697 = scalar_lea.vmem %s0, %s696
      %p698 = pneg %p57
      %p699 = pneg %p54
      %p700 = pneg %p78
      %p701 = pneg %p75
      %p702 = pneg %p99
      %p703 = pneg %p96
      %p704 = pneg %p120
      %p705 = pneg %p117
      %p706 = pneg %p141
      %p707 = pneg %p138
      %p708 = pneg %p162
      %p709 = pneg %p159
      %p710 = pneg %p183
      %p711 = pneg %p180
      %p712 = pneg %p204
      %p713 = pneg %p201
      %p714 = pneg %p225
      %p715 = pneg %p222
      %p716 = pneg %p246
      %p717 = pneg %p243
      %p718 = pneg %p267
      %p719 = pneg %p264
      %p720 = pneg %p288
      %p721 = pneg %p285
      %p722 = pneg %p309
      %p723 = pneg %p306
      %p724 = pneg %p330
      %p725 = pneg %p327
      %p726 = pneg %p351
      %p727 = pneg %p348
      %p728 = pneg %p372
      %p729 = pneg %p369
      %p730 = pneg %p393
      %p731 = pneg %p390
      %p732 = pneg %p414
      %p733 = pneg %p411
      %p734 = pneg %p435
      %p735 = pneg %p432
      %p736 = pneg %p456
      %p737 = pneg %p453
      %p738 = pneg %p477
      %p739 = pneg %p474
      %p740 = pneg %p498
      %p741 = pneg %p495
      %p742 = pneg %p519
      %p743 = pneg %p516
      %p744 = pneg %p540
      %p745 = pneg %p537
      %p746 = pneg %p561
      %p747 = pneg %p558
      %p748 = pneg %p587
      %p749 = pneg %p584
      %p750 = scmp.lt.s32.totalorder %s36, 1
      %s751 = scalar_select %p750, %s36, 1
      %s752 = smul.addr %s751, 4
      %s753 = scalar_lea.vmem %s25, %s752
      %p754 = scmp.lt.s32.totalorder %s36, 1
      %s755 = scalar_select %p754, %s36, 1
      %s756 = smul.addr %s755, 2
      %s757 = smul.addr %s756, 8
      %s758 = scalar_lea.vmem %s0, %s757
      %p759 = scmp.lt.s32.totalorder %s36, 1
      %s760 = scalar_select %p759, %s36, 1
      %s761 = smul.addr %s760, 4
      %s762 = scalar_lea.vmem %s25, %s761
      %v763 = vld [vmem:[%s758] sm:$0xff]
      %v764 = vld [vmem:[%s758 + $0x8] sm:$0xff]
      %v765 = vld [vmem:[%s1] sm:$0xff]
      %v766 = vld [vmem:[%s1 + $0x8] sm:$0xff]
      %v767 = vld [vmem:[%s1 + $0x10] sm:$0xff]
      %v768 = vld [vmem:[%s1 + $0x18] sm:$0xff]
      %v769 = vld [vmem:[%s2] sm:$0x1]
      %v770 = vld [vmem:[%s3] sm:$0xff]
      %v771 = vld [vmem:[%s3 + $0x8] sm:$0xff]
      %v772 = vld [vmem:[%s3 + $0x10] sm:$0xff]
      %v773 = vld [vmem:[%s3 + $0x18] sm:$0xff]
      %v774 = vld [vmem:[%s3 + $0x20] sm:$0xff]
      %v775 = vld [vmem:[%s4] sm:$0x1]
      %v776 = vld [vmem:[%s5] sm:$0xff]
      %v777 = vld [vmem:[%s5 + $0x8] sm:$0xff]
      %v778 = vld [vmem:[%s5 + $0x10] sm:$0xff]
      %v779 = vld [vmem:[%s6] sm:$0x1]
      %v780 = vld [vmem:[%s7] sm:$0xf]
      %v781 = vld [vmem:[%s8] sm:$0x1]
      %v783 = vlaneseq
      %v784 = vshrl.u32 %v783, 7
      %v785 = vsub.s32 0, %v784
      %v786 = vrot.slane %v781, %v785
      %vm788 = vcmask 31744
      %v790 = vsel %vm788, %v763, 0
      %v793 = vsel %vm788, %v764, 0
      %vm795 = vcmask 1043456
      %v797 = vsel %vm795, %v780, 0
      %799 = vmatprep.subr.mxu0 0.0
      %800 = vmatpush1.msra.mxu0 %v797
      %801 = vmatprep.subr.mxu0 0.0
      %802 = vmatpush1.msra.mxu0 0.0
      %803 = vmatprep.subr.mxu0 0.0
      %804 = vmatpush1.msra.mxu0 0.0
      %805 = vmatprep.subr.mxu0 0.0
      %806 = vmatpush1.msra.mxu0 0.0
      %807 = vmatprep.subr.mxu0 0.0
      %808 = vmatpush1.msra.mxu0 0.0
      %809 = vmatprep.subr.mxu0 0.0
      %810 = vmatpush1.msra.mxu0 0.0
      %811 = vmatprep.subr.mxu0 0.0
      %812 = vmatpush1.msra.mxu0 0.0
      %813 = vmatprep.subr.mxu0 0.0
      %814 = vmatpush1.msra.mxu0 0.0
      %815 = vmatprep.subr.mxu0 0.0
      %816 = vmatpush1.msra.mxu0 0.0
      %817 = vmatprep.subr.mxu0 0.0
      %818 = vmatpush1.msra.mxu0 0.0
      %819 = vmatprep.subr.mxu0 0.0
      %820 = vmatpush1.msra.mxu0 0.0
      %821 = vmatprep.subr.mxu0 0.0
      %822 = vmatpush1.msra.mxu0 0.0
      %823 = vmatprep.subr.mxu0 0.0
      %824 = vmatpush1.msra.mxu0 0.0
      %825 = vmatprep.subr.mxu0 0.0
      %826 = vmatpush1.msra.mxu0 0.0
      %827 = vmatprep.subr.mxu0 0.0
      %828 = vmatpush1.msra.mxu0 0.0
      %829 = vmatprep.subr.mxu0 0.0
      %830 = vmatpush1.msra.mxu0 0.0
      %831 = vmatprep.subr.mxu0 0.0
      %832 = vmatpush1.msra.mxu0 0.0
      %833 = vmatprep.subr.mxu0 0.0
      %834 = vmatpush1.msra.mxu0 0.0
      %835 = vmatprep.subr.mxu0 0.0
      %836 = vmatpush1.msra.mxu0 0.0
      %837 = vmatprep.subr.mxu0 0.0
      %838 = vmatpush1.msra.mxu0 0.0
      %839 = vmatprep.subr.mxu0 0.0
      %840 = vmatpush1.msra.mxu0 0.0
      %841 = vmatprep.subr.mxu0 0.0
      %842 = vmatpush1.msra.mxu0 0.0
      %843 = vmatprep.subr.mxu0 0.0
      %844 = vmatpush1.msra.mxu0 0.0
      %845 = vmatprep.subr.mxu0 0.0
      %846 = vmatpush1.msra.mxu0 0.0
      %847 = vmatprep.subr.mxu0 0.0
      %848 = vmatpush1.msra.mxu0 0.0
      %849 = vmatprep.subr.mxu0 0.0
      %850 = vmatpush1.msra.mxu0 0.0
      %851 = vmatprep.subr.mxu0 0.0
      %852 = vmatpush1.msra.mxu0 0.0
      %853 = vmatprep.subr.mxu0 0.0
      %854 = vmatpush1.msra.mxu0 0.0
      %855 = vmatprep.subr.mxu0 0.0
      %856 = vmatpush1.msra.mxu0 0.0
      %857 = vmatprep.subr.mxu0 0.0
      %858 = vmatpush1.msra.mxu0 0.0
      %859 = vmatprep.subr.mxu0 0.0
      %860 = vmatpush1.msra.mxu0 0.0
      %861 = vmatprep.subr.mxu0 0.0
      %862 = vmatpush1.msra.mxu0 0.0
      %863 = vmatprep.mubr.f32.mxu0 0.0
      %864 = vmatmul.mubr.f32.gmra.mrb[0].mxu0 %v790
      %v865 = vpop.f32.mrb[0].mxu0
      %v866 = vadd.f32 %v786, %v865
      %v867 = vpop.f32.mrb[0].mxu0
      %868 = vmatprep.mubr.f32.mxu0 0.0
      %869 = vmatmul.mubr.f32.gmra.mrb[0].mxu0 %v793
      %v870 = vpop.f32.mrb[0].mxu0
      %v871 = vadd.f32 %v786, %v870
      %v872 = vpop.f32.mrb[0].mxu0
      %873 = vdwg.mxu0
      %vm874 = vcmask 1042432
      %v875 = vrot.slane %v763, 5
      %v876 = vrot.slane %v764, 5
      %v877 = vsel %vm874, %v875, %v876
      %v881 = vsel %vm874, 0.0, %v875
      %v882 = vsel %vm874, %v876, 0.0
      %vm885 = vcmask 1046528
      %v886 = vrot.slane %v881, 1
      %v887 = vrot.slane %v877, 1
      %v888 = vsel %vm885, %v886, %v887
      %v889 = vrot.slane %v882, 1
      %v890 = vsel %vm885, %v887, %v889
      %891 = vrot.lane.b32.xlu0 %v888, 4
      %v892 = vpop.permute.xlu0 %891
      %893 = vrot.lane.b32.xlu0 %v890, 4
      %v894 = vpop.permute.xlu0 %893
      %vm897 = vcmask 1045504
      %v898 = vrot.slane %v881, 2
      %v899 = vrot.slane %v877, 2
      %v900 = vsel %vm897, %v898, %v899
      %v901 = vrot.slane %v882, 2
      %v902 = vsel %vm897, %v899, %v901
      %903 = vrot.lane.b32.xlu0 %v900, 8
      %v904 = vpop.permute.xlu0 %903
      %905 = vrot.lane.b32.xlu0 %v902, 8
      %v906 = vpop.permute.xlu0 %905
      %vm909 = vcmask 1044480
      %v910 = vrot.slane %v881, 3
      %v911 = vrot.slane %v877, 3
      %v912 = vsel %vm909, %v910, %v911
      %v913 = vrot.slane %v882, 3
      %v914 = vsel %vm909, %v911, %v913
      %915 = vrot.lane.b32.xlu0 %v912, 12
      %v916 = vpop.permute.xlu0 %915
      %917 = vrot.lane.b32.xlu0 %v914, 12
      %v918 = vpop.permute.xlu0 %917
      %v921 = vrot.slane %v881, 4
      %v922 = vrot.slane %v877, 4
      %v923 = vsel %vm795, %v921, %v922
      %v924 = vrot.slane %v882, 4
      %v925 = vsel %vm795, %v922, %v924
      %926 = vrot.lane.b32.xlu0 %v923, 16
      %v927 = vpop.permute.xlu0 %926
      %928 = vrot.lane.b32.xlu0 %v925, 16
      %v929 = vpop.permute.xlu0 %928
      %v932 = vrot.slane %v881, 5
      %v933 = vrot.slane %v877, 5
      %v934 = vsel %vm874, %v932, %v933
      %v935 = vrot.slane %v882, 5
      %v936 = vsel %vm874, %v933, %v935
      %937 = vrot.lane.b32.xlu0 %v934, 20
      %v938 = vpop.permute.xlu0 %937
      %939 = vrot.lane.b32.xlu0 %v936, 20
      %v940 = vpop.permute.xlu0 %939
      %vm943 = vcmask 1041408
      %v944 = vrot.slane %v881, 6
      %v945 = vrot.slane %v877, 6
      %v946 = vsel %vm943, %v944, %v945
      %v947 = vrot.slane %v882, 6
      %v948 = vsel %vm943, %v945, %v947
      %949 = vrot.lane.b32.xlu0 %v946, 24
      %v950 = vpop.permute.xlu0 %949
      %951 = vrot.lane.b32.xlu0 %v948, 24
      %v952 = vpop.permute.xlu0 %951
      %vm955 = vcmask 1040384
      %v956 = vrot.slane %v881, 7
      %v957 = vrot.slane %v877, 7
      %v958 = vsel %vm955, %v956, %v957
      %v959 = vrot.slane %v882, 7
      %v960 = vsel %vm955, %v957, %v959
      %961 = vrot.lane.b32.xlu0 %v958, 28
      %v962 = vpop.permute.xlu0 %961
      %963 = vrot.lane.b32.xlu0 %v960, 28
      %v964 = vpop.permute.xlu0 %963
      %v967 = vsel %vm788, %v881, %v892
      %v968 = vsel %vm788, %v877, %v894
      %vm969 = vcmask 64512
      %v970 = vsel %vm969, %v967, %v904
      %v971 = vsel %vm969, %v968, %v906
      %vm972 = vcmask 97280
      %v973 = vsel %vm972, %v970, %v916
      %v974 = vsel %vm972, %v971, %v918
      %vm975 = vcmask 130048
      %v976 = vsel %vm975, %v973, %v927
      %v977 = vsel %vm975, %v974, %v929
      %vm978 = vcmask 162816
      %v979 = vsel %vm978, %v976, %v938
      %v980 = vsel %vm978, %v977, %v940
      %vm981 = vcmask 195584
      %v982 = vsel %vm981, %v979, %v950
      %v983 = vsel %vm981, %v980, %v952
      %vm984 = vcmask 228352
      %v985 = vsel %vm984, %v982, %v962
      %v986 = vsel %vm984, %v983, %v964
      %v988 = vlaneseq
      %v989 = vshrl.u32 %v988, 7
      %v990 = vsub.s32 0, %v989
      %v991 = vrot.slane %v769, %v990
      %vm993 = vcmask 261120
      %v995 = vsel %vm993, %v985, 0
      %v998 = vsel %vm993, %v986, 0
      %1000 = vmatprep.subr.mxu0 0.0
      %1001 = vmatpush1.msra.mxu0 %v765
      %1002 = vmatprep.subr.mxu0 0.0
      %1003 = vmatpush1.msra.mxu0 %v766
      %1004 = vmatprep.subr.mxu0 0.0
      %1005 = vmatpush1.msra.mxu0 %v767
      %1006 = vmatprep.subr.mxu0 0.0
      %1007 = vmatpush1.msra.mxu0 %v768
      %1008 = vmatprep.subr.mxu0 0.0
      %1009 = vmatpush1.msra.mxu0 0.0
      %1010 = vmatprep.subr.mxu0 0.0
      %1011 = vmatpush1.msra.mxu0 0.0
      %1012 = vmatprep.subr.mxu0 0.0
      %1013 = vmatpush1.msra.mxu0 0.0
      %1014 = vmatprep.subr.mxu0 0.0
      %1015 = vmatpush1.msra.mxu0 0.0
      %1016 = vmatprep.subr.mxu0 0.0
      %1017 = vmatpush1.msra.mxu0 0.0
      %1018 = vmatprep.subr.mxu0 0.0
      %1019 = vmatpush1.msra.mxu0 0.0
      %1020 = vmatprep.subr.mxu0 0.0
      %1021 = vmatpush1.msra.mxu0 0.0
      %1022 = vmatprep.subr.mxu0 0.0
      %1023 = vmatpush1.msra.mxu0 0.0
      %1024 = vmatprep.subr.mxu0 0.0
      %1025 = vmatpush1.msra.mxu0 0.0
      %1026 = vmatprep.subr.mxu0 0.0
      %1027 = vmatpush1.msra.mxu0 0.0
      %1028 = vmatprep.subr.mxu0 0.0
      %1029 = vmatpush1.msra.mxu0 0.0
      %1030 = vmatprep.subr.mxu0 0.0
      %1031 = vmatpush1.msra.mxu0 0.0
      %1032 = vmatprep.subr.mxu0 0.0
      %1033 = vmatpush1.msra.mxu0 0.0
      %1034 = vmatprep.subr.mxu0 0.0
      %1035 = vmatpush1.msra.mxu0 0.0
      %1036 = vmatprep.subr.mxu0 0.0
      %1037 = vmatpush1.msra.mxu0 0.0
      %1038 = vmatprep.subr.mxu0 0.0
      %1039 = vmatpush1.msra.mxu0 0.0
      %1040 = vmatprep.subr.mxu0 0.0
      %1041 = vmatpush1.msra.mxu0 0.0
      %1042 = vmatprep.subr.mxu0 0.0
      %1043 = vmatpush1.msra.mxu0 0.0
      %1044 = vmatprep.subr.mxu0 0.0
      %1045 = vmatpush1.msra.mxu0 0.0
      %1046 = vmatprep.subr.mxu0 0.0
      %1047 = vmatpush1.msra.mxu0 0.0
      %1048 = vmatprep.subr.mxu0 0.0
      %1049 = vmatpush1.msra.mxu0 0.0
      %1050 = vmatprep.subr.mxu0 0.0
      %1051 = vmatpush1.msra.mxu0 0.0
      %1052 = vmatprep.subr.mxu0 0.0
      %1053 = vmatpush1.msra.mxu0 0.0
      %1054 = vmatprep.subr.mxu0 0.0
      %1055 = vmatpush1.msra.mxu0 0.0
      %1056 = vmatprep.subr.mxu0 0.0
      %1057 = vmatpush1.msra.mxu0 0.0
      %1058 = vmatprep.subr.mxu0 0.0
      %1059 = vmatpush1.msra.mxu0 0.0
      %1060 = vmatprep.subr.mxu0 0.0
      %1061 = vmatpush1.msra.mxu0 0.0
      %1062 = vmatprep.subr.mxu0 0.0
      %1063 = vmatpush1.msra.mxu0 0.0
      %1064 = vmatprep.mubr.f32.mxu0 0.0
      %1065 = vmatmul.mubr.f32.gmra.mrb[0].mxu0 %v995
      %v1066 = vpop.f32.mrb[0].mxu0
      %v1067 = vadd.f32 %v991, %v1066
      %v1068 = vpop.f32.mrb[0].mxu0
      %1069 = vmatprep.mubr.f32.mxu0 0.0
      %1070 = vmatmul.mubr.f32.gmra.mrb[0].mxu0 %v998
      %v1071 = vpop.f32.mrb[0].mxu0
      %v1072 = vadd.f32 %v991, %v1071
      %v1073 = vpop.f32.mrb[0].mxu0
      %1074 = vdwg.mxu0
      %v1075 = vmax.f32 %v1067, 0.0
      %v1076 = vmax.f32 %v1072, 0.0
      %v1079 = vrot.slane %v1075, 6
      %v1080 = vrot.slane %v1076, 6
      %v1081 = vsel %vm943, %v1079, %v1080
      %v1085 = vsel %vm943, 0.0, %v1079
      %v1086 = vsel %vm943, %v1080, 0.0
      %v1089 = vrot.slane %v1085, 1
      %v1090 = vrot.slane %v1081, 1
      %v1091 = vsel %vm885, %v1089, %v1090
      %v1092 = vrot.slane %v1086, 1
      %v1093 = vsel %vm885, %v1090, %v1092
      %1094 = vrot.lane.b32.xlu0 %v1091, 8
      %v1095 = vpop.permute.xlu0 %1094
      %1096 = vrot.lane.b32.xlu0 %v1093, 8
      %v1097 = vpop.permute.xlu0 %1096
      %v1100 = vrot.slane %v1085, 2
      %v1101 = vrot.slane %v1081, 2
      %v1102 = vsel %vm897, %v1100, %v1101
      %v1103 = vrot.slane %v1086, 2
      %v1104 = vsel %vm897, %v1101, %v1103
      %1105 = vrot.lane.b32.xlu0 %v1102, 16
      %v1106 = vpop.permute.xlu0 %1105
      %1107 = vrot.lane.b32.xlu0 %v1104, 16
      %v1108 = vpop.permute.xlu0 %1107
      %v1111 = vrot.slane %v1085, 3
      %v1112 = vrot.slane %v1081, 3
      %v1113 = vsel %vm909, %v1111, %v1112
      %v1114 = vrot.slane %v1086, 3
      %v1115 = vsel %vm909, %v1112, %v1114
      %1116 = vrot.lane.b32.xlu0 %v1113, 24
      %v1117 = vpop.permute.xlu0 %1116
      %1118 = vrot.lane.b32.xlu0 %v1115, 24
      %v1119 = vpop.permute.xlu0 %1118
      %v1122 = vrot.slane %v1085, 4
      %v1123 = vrot.slane %v1081, 4
      %v1124 = vsel %vm795, %v1122, %v1123
      %v1125 = vrot.slane %v1086, 4
      %v1126 = vsel %vm795, %v1123, %v1125
      %1127 = vrot.lane.b32.xlu0 %v1124, 32
      %v1128 = vpop.permute.xlu0 %1127
      %1129 = vrot.lane.b32.xlu0 %v1126, 32
      %v1130 = vpop.permute.xlu0 %1129
      %v1133 = vsel %vm969, %v1085, %v1095
      %v1134 = vsel %vm969, %v1081, %v1097
      %v1135 = vsel %vm975, %v1133, %v1106
      %v1136 = vsel %vm975, %v1134, %v1108
      %v1137 = vsel %vm981, %v1135, %v1117
      %v1138 = vsel %vm981, %v1136, %v1119
      %v1139 = vsel %vm993, %v1137, %v1128
      %v1140 = vsel %vm993, %v1138, %v1130
      %v1142 = vlaneseq
      %v1143 = vshrl.u32 %v1142, 7
      %v1144 = vsub.s32 0, %v1143
      %v1145 = vrot.slane %v775, %v1144
      %vm1147 = vcmask 326656
      %v1149 = vsel %vm1147, %v1139, 0
      %v1152 = vsel %vm1147, %v1140, 0
      %1154 = vmatprep.subr.mxu0 0.0
      %1155 = vmatpush1.msra.mxu0 %v770
      %1156 = vmatprep.subr.mxu0 0.0
      %1157 = vmatpush1.msra.mxu0 %v771
      %1158 = vmatprep.subr.mxu0 0.0
      %1159 = vmatpush1.msra.mxu0 %v772
      %1160 = vmatprep.subr.mxu0 0.0
      %1161 = vmatpush1.msra.mxu0 %v773
      %1162 = vmatprep.subr.mxu0 0.0
      %1163 = vmatpush1.msra.mxu0 %v774
      %1164 = vmatprep.subr.mxu0 0.0
      %1165 = vmatpush1.msra.mxu0 0.0
      %1166 = vmatprep.subr.mxu0 0.0
      %1167 = vmatpush1.msra.mxu0 0.0
      %1168 = vmatprep.subr.mxu0 0.0
      %1169 = vmatpush1.msra.mxu0 0.0
      %1170 = vmatprep.subr.mxu0 0.0
      %1171 = vmatpush1.msra.mxu0 0.0
      %1172 = vmatprep.subr.mxu0 0.0
      %1173 = vmatpush1.msra.mxu0 0.0
      %1174 = vmatprep.subr.mxu0 0.0
      %1175 = vmatpush1.msra.mxu0 0.0
      %1176 = vmatprep.subr.mxu0 0.0
      %1177 = vmatpush1.msra.mxu0 0.0
      %1178 = vmatprep.subr.mxu0 0.0
      %1179 = vmatpush1.msra.mxu0 0.0
      %1180 = vmatprep.subr.mxu0 0.0
      %1181 = vmatpush1.msra.mxu0 0.0
      %1182 = vmatprep.subr.mxu0 0.0
      %1183 = vmatpush1.msra.mxu0 0.0
      %1184 = vmatprep.subr.mxu0 0.0
      %1185 = vmatpush1.msra.mxu0 0.0
      %1186 = vmatprep.subr.mxu0 0.0
      %1187 = vmatpush1.msra.mxu0 0.0
      %1188 = vmatprep.subr.mxu0 0.0
      %1189 = vmatpush1.msra.mxu0 0.0
      %1190 = vmatprep.subr.mxu0 0.0
      %1191 = vmatpush1.msra.mxu0 0.0
      %1192 = vmatprep.subr.mxu0 0.0
      %1193 = vmatpush1.msra.mxu0 0.0
      %1194 = vmatprep.subr.mxu0 0.0
      %1195 = vmatpush1.msra.mxu0 0.0
      %1196 = vmatprep.subr.mxu0 0.0
      %1197 = vmatpush1.msra.mxu0 0.0
      %1198 = vmatprep.subr.mxu0 0.0
      %1199 = vmatpush1.msra.mxu0 0.0
      %1200 = vmatprep.subr.mxu0 0.0
      %1201 = vmatpush1.msra.mxu0 0.0
      %1202 = vmatprep.subr.mxu0 0.0
      %1203 = vmatpush1.msra.mxu0 0.0
      %1204 = vmatprep.subr.mxu0 0.0
      %1205 = vmatpush1.msra.mxu0 0.0
      %1206 = vmatprep.subr.mxu0 0.0
      %1207 = vmatpush1.msra.mxu0 0.0
      %1208 = vmatprep.subr.mxu0 0.0
      %1209 = vmatpush1.msra.mxu0 0.0
      %1210 = vmatprep.subr.mxu0 0.0
      %1211 = vmatpush1.msra.mxu0 0.0
      %1212 = vmatprep.subr.mxu0 0.0
      %1213 = vmatpush1.msra.mxu0 0.0
      %1214 = vmatprep.subr.mxu0 0.0
      %1215 = vmatpush1.msra.mxu0 0.0
      %1216 = vmatprep.subr.mxu0 0.0
      %1217 = vmatpush1.msra.mxu0 0.0
      %1218 = vmatprep.mubr.f32.mxu0 0.0
      %1219 = vmatmul.mubr.f32.gmra.mrb[0].mxu0 %v1149
      %v1220 = vpop.f32.mrb[0].mxu0
      %v1221 = vadd.f32 %v1145, %v1220
      %v1222 = vpop.f32.mrb[0].mxu0
      %1223 = vmatprep.mubr.f32.mxu0 0.0
      %1224 = vmatmul.mubr.f32.gmra.mrb[0].mxu0 %v1152
      %v1225 = vpop.f32.mrb[0].mxu0
      %v1226 = vadd.f32 %v1145, %v1225
      %v1227 = vpop.f32.mrb[0].mxu0
      %1228 = vdwg.mxu0
      %v1229 = vmax.f32 %v1221, 0.0
      %v1230 = vmax.f32 %v1226, 0.0
      %v1233 = vrot.slane %v1229, 7
      %v1234 = vrot.slane %v1230, 7
      %v1235 = vsel %vm955, %v1233, %v1234
      %v1239 = vsel %vm955, 0.0, %v1233
      %v1240 = vsel %vm955, %v1234, 0.0
      %v1243 = vrot.slane %v1239, 1
      %v1244 = vrot.slane %v1235, 1
      %v1245 = vsel %vm885, %v1243, %v1244
      %v1246 = vrot.slane %v1240, 1
      %v1247 = vsel %vm885, %v1244, %v1246
      %1248 = vrot.lane.b32.xlu0 %v1245, 8
      %v1249 = vpop.permute.xlu0 %1248
      %1250 = vrot.lane.b32.xlu0 %v1247, 8
      %v1251 = vpop.permute.xlu0 %1250
      %v1254 = vrot.slane %v1239, 2
      %v1255 = vrot.slane %v1235, 2
      %v1256 = vsel %vm897, %v1254, %v1255
      %v1257 = vrot.slane %v1240, 2
      %v1258 = vsel %vm897, %v1255, %v1257
      %1259 = vrot.lane.b32.xlu0 %v1256, 16
      %v1260 = vpop.permute.xlu0 %1259
      %1261 = vrot.lane.b32.xlu0 %v1258, 16
      %v1262 = vpop.permute.xlu0 %1261
      %v1265 = vsel %vm969, %v1239, %v1249
      %v1266 = vsel %vm969, %v1235, %v1251
      %v1267 = vsel %vm975, %v1265, %v1260
      %v1268 = vsel %vm975, %v1266, %v1262
      %v1270 = vlaneseq
      %v1271 = vshrl.u32 %v1270, 7
      %v1272 = vsub.s32 0, %v1271
      %v1273 = vrot.slane %v779, %v1272
      %v1276 = vsel %vm981, %v1267, 0
      %v1279 = vsel %vm981, %v1268, 0
      %1281 = vmatprep.subr.mxu0 0.0
      %1282 = vmatpush1.msra.mxu0 %v776
      %1283 = vmatprep.subr.mxu0 0.0
      %1284 = vmatpush1.msra.mxu0 %v777
      %1285 = vmatprep.subr.mxu0 0.0
      %1286 = vmatpush1.msra.mxu0 %v778
      %1287 = vmatprep.subr.mxu0 0.0
      %1288 = vmatpush1.msra.mxu0 0.0
      %1289 = vmatprep.subr.mxu0 0.0
      %1290 = vmatpush1.msra.mxu0 0.0
      %1291 = vmatprep.subr.mxu0 0.0
      %1292 = vmatpush1.msra.mxu0 0.0
      %1293 = vmatprep.subr.mxu0 0.0
      %1294 = vmatpush1.msra.mxu0 0.0
      %1295 = vmatprep.subr.mxu0 0.0
      %1296 = vmatpush1.msra.mxu0 0.0
      %1297 = vmatprep.subr.mxu0 0.0
      %1298 = vmatpush1.msra.mxu0 0.0
      %1299 = vmatprep.subr.mxu0 0.0
      %1300 = vmatpush1.msra.mxu0 0.0
      %1301 = vmatprep.subr.mxu0 0.0
      %1302 = vmatpush1.msra.mxu0 0.0
      %1303 = vmatprep.subr.mxu0 0.0
      %1304 = vmatpush1.msra.mxu0 0.0
      %1305 = vmatprep.subr.mxu0 0.0
      %1306 = vmatpush1.msra.mxu0 0.0
      %1307 = vmatprep.subr.mxu0 0.0
      %1308 = vmatpush1.msra.mxu0 0.0
      %1309 = vmatprep.subr.mxu0 0.0
      %1310 = vmatpush1.msra.mxu0 0.0
      %1311 = vmatprep.subr.mxu0 0.0
      %1312 = vmatpush1.msra.mxu0 0.0
      %1313 = vmatprep.subr.mxu0 0.0
      %1314 = vmatpush1.msra.mxu0 0.0
      %1315 = vmatprep.subr.mxu0 0.0
      %1316 = vmatpush1.msra.mxu0 0.0
      %1317 = vmatprep.subr.mxu0 0.0
      %1318 = vmatpush1.msra.mxu0 0.0
      %1319 = vmatprep.subr.mxu0 0.0
      %1320 = vmatpush1.msra.mxu0 0.0
      %1321 = vmatprep.subr.mxu0 0.0
      %1322 = vmatpush1.msra.mxu0 0.0
      %1323 = vmatprep.subr.mxu0 0.0
      %1324 = vmatpush1.msra.mxu0 0.0
      %1325 = vmatprep.subr.mxu0 0.0
      %1326 = vmatpush1.msra.mxu0 0.0
      %1327 = vmatprep.subr.mxu0 0.0
      %1328 = vmatpush1.msra.mxu0 0.0
      %1329 = vmatprep.subr.mxu0 0.0
      %1330 = vmatpush1.msra.mxu0 0.0
      %1331 = vmatprep.subr.mxu0 0.0
      %1332 = vmatpush1.msra.mxu0 0.0
      %1333 = vmatprep.subr.mxu0 0.0
      %1334 = vmatpush1.msra.mxu0 0.0
      %1335 = vmatprep.subr.mxu0 0.0
      %1336 = vmatpush1.msra.mxu0 0.0
      %1337 = vmatprep.subr.mxu0 0.0
      %1338 = vmatpush1.msra.mxu0 0.0
      %1339 = vmatprep.subr.mxu0 0.0
      %1340 = vmatpush1.msra.mxu0 0.0
      %1341 = vmatprep.subr.mxu0 0.0
      %1342 = vmatpush1.msra.mxu0 0.0
      %1343 = vmatprep.subr.mxu0 0.0
      %1344 = vmatpush1.msra.mxu0 0.0
      %1345 = vmatprep.mubr.f32.mxu0 0.0
      %1346 = vmatmul.mubr.f32.gmra.mrb[0].mxu0 %v1276
      %v1347 = vpop.f32.mrb[0].mxu0
      %v1348 = vadd.f32 %v1273, %v1347
      %v1349 = vpop.f32.mrb[0].mxu0
      %1350 = vmatprep.mubr.f32.mxu0 0.0
      %1351 = vmatmul.mubr.f32.gmra.mrb[0].mxu0 %v1279
      %v1352 = vpop.f32.mrb[0].mxu0
      %v1353 = vadd.f32 %v1273, %v1352
      %v1354 = vpop.f32.mrb[0].mxu0
      %1355 = vdwg.mxu0
      %v1356 = vadd.f32 %v1348, %v866
      %v1357 = vadd.f32 %v1353, %v871
      %v1358 = vmax.f32 %v1356, 0.0
      %v1359 = vmax.f32 %v1357, 0.0
      %v1360 = vld [vmem:[%s9] sm:$0xff]
      %v1361 = vld [vmem:[%s9 + $0x8] sm:$0xff]
      %v1362 = vld [vmem:[%s9 + $0x10] sm:$0xff]
      %v1363 = vld [vmem:[%s9 + $0x18] sm:$0xff]
      %v1364 = vld [vmem:[%s9 + $0x20] sm:$0xff]
      %v1365 = vld [vmem:[%s9 + $0x28] sm:$0xff]
      %v1366 = vld [vmem:[%s9 + $0x30] sm:$0xff]
      %v1367 = vld [vmem:[%s9 + $0x38] sm:$0xff]
      %v1368 = vld [vmem:[%s10] sm:$0x1]
      %v1369 = vld [vmem:[%s11] sm:$0xff]
      %v1370 = vld [vmem:[%s11 + $0x8] sm:$0xff]
      %v1371 = vld [vmem:[%s11 + $0x10] sm:$0xff]
      %v1372 = vld [vmem:[%s11 + $0x18] sm:$0xff]
      %v1373 = vld [vmem:[%s11 + $0x20] sm:$0xff]
      %v1374 = vld [vmem:[%s11 + $0x28] sm:$0xff]
      %v1375 = vld [vmem:[%s11 + $0x30] sm:$0xff]
      %v1376 = vld [vmem:[%s11 + $0x38] sm:$0xff]
      %v1377 = vld [vmem:[%s11 + $0x40] sm:$0xff]
      %v1378 = vld [vmem:[%s11 + $0x48] sm:$0xff]
      %v1379 = vld [vmem:[%s12] sm:$0x1]
      %v1380 = vld [vmem:[%s13] sm:$0xff]
      %v1381 = vld [vmem:[%s13 + $0x8] sm:$0xff]
      %v1382 = vld [vmem:[%s13 + $0x10] sm:$0xff]
      %v1383 = vld [vmem:[%s13 + $0x18] sm:$0xff]
      %v1384 = vld [vmem:[%s13 + $0x20] sm:$0xff]
      %v1385 = vld [vmem:[%s13 + $0x28] sm:$0xff]
      %v1386 = vld [vmem:[%s14] sm:$0x1]
      %v1387 = vld [vmem:[%s15] sm:$0xff]
      %v1388 = vld [vmem:[%s16] sm:$0x1]
      %v1390 = vlaneseq
      %v1391 = vshrl.u32 %v1390, 7
      %v1392 = vsub.s32 0, %v1391
      %v1393 = vrot.slane %v1388, %v1392
      %v1396 = vsel %vm969, %v1358, 0
      %v1399 = vsel %vm969, %v1359, 0
      %1401 = vmatprep.subr.mxu0 0.0
      %1402 = vmatpush1.msra.mxu0 %v1387
      %1403 = vmatprep.subr.mxu0 0.0
      %1404 = vmatpush1.msra.mxu0 0.0
      %1405 = vmatprep.subr.mxu0 0.0
      %1406 = vmatpush1.msra.mxu0 0.0
      %1407 = vmatprep.subr.mxu0 0.0
      %1408 = vmatpush1.msra.mxu0 0.0
      %1409 = vmatprep.subr.mxu0 0.0
      %1410 = vmatpush1.msra.mxu0 0.0
      %1411 = vmatprep.subr.mxu0 0.0
      %1412 = vmatpush1.msra.mxu0 0.0
      %1413 = vmatprep.subr.mxu0 0.0
      %1414 = vmatpush1.msra.mxu0 0.0
      %1415 = vmatprep.subr.mxu0 0.0
      %1416 = vmatpush1.msra.mxu0 0.0
      %1417 = vmatprep.subr.mxu0 0.0
      %1418 = vmatpush1.msra.mxu0 0.0
      %1419 = vmatprep.subr.mxu0 0.0
      %1420 = vmatpush1.msra.mxu0 0.0
      %1421 = vmatprep.subr.mxu0 0.0
      %1422 = vmatpush1.msra.mxu0 0.0
      %1423 = vmatprep.subr.mxu0 0.0
      %1424 = vmatpush1.msra.mxu0 0.0
      %1425 = vmatprep.subr.mxu0 0.0
      %1426 = vmatpush1.msra.mxu0 0.0
      %1427 = vmatprep.subr.mxu0 0.0
      %1428 = vmatpush1.msra.mxu0 0.0
      %1429 = vmatprep.subr.mxu0 0.0
      %1430 = vmatpush1.msra.mxu0 0.0
      %1431 = vmatprep.subr.mxu0 0.0
      %1432 = vmatpush1.msra.mxu0 0.0
      %1433 = vmatprep.subr.mxu0 0.0
      %1434 = vmatpush1.msra.mxu0 0.0
      %1435 = vmatprep.subr.mxu0 0.0
      %1436 = vmatpush1.msra.mxu0 0.0
      %1437 = vmatprep.subr.mxu0 0.0
      %1438 = vmatpush1.msra.mxu0 0.0
      %1439 = vmatprep.subr.mxu0 0.0
      %1440 = vmatpush1.msra.mxu0 0.0
      %1441 = vmatprep.subr.mxu0 0.0
      %1442 = vmatpush1.msra.mxu0 0.0
      %1443 = vmatprep.subr.mxu0 0.0
      %1444 = vmatpush1.msra.mxu0 0.0
      %1445 = vmatprep.subr.mxu0 0.0
      %1446 = vmatpush1.msra.mxu0 0.0
      %1447 = vmatprep.subr.mxu0 0.0
      %1448 = vmatpush1.msra.mxu0 0.0
      %1449 = vmatprep.subr.mxu0 0.0
      %1450 = vmatpush1.msra.mxu0 0.0
      %1451 = vmatprep.subr.mxu0 0.0
      %1452 = vmatpush1.msra.mxu0 0.0
      %1453 = vmatprep.subr.mxu0 0.0
      %1454 = vmatpush1.msra.mxu0 0.0
      %1455 = vmatprep.subr.mxu0 0.0
      %1456 = vmatpush1.msra.mxu0 0.0
      %1457 = vmatprep.subr.mxu0 0.0
      %1458 = vmatpush1.msra.mxu0 0.0
      %1459 = vmatprep.subr.mxu0 0.0
      %1460 = vmatpush1.msra.mxu0 0.0
      %1461 = vmatprep.subr.mxu0 0.0
      %1462 = vmatpush1.msra.mxu0 0.0
      %1463 = vmatprep.subr.mxu0 0.0
      %1464 = vmatpush1.msra.mxu0 0.0
      %1465 = vmatprep.mubr.f32.mxu0 0.0
      %1466 = vmatmul.mubr.f32.gmra.mrb[0].mxu0 %v1396
      %v1467 = vpop.f32.mrb[0].mxu0
      %v1468 = vadd.f32 %v1393, %v1467
      %v1469 = vpop.f32.mrb[0].mxu0
      %1470 = vmatprep.mubr.f32.mxu0 0.0
      %1471 = vmatmul.mubr.f32.gmra.mrb[0].mxu0 %v1399
      %v1472 = vpop.f32.mrb[0].mxu0
      %v1473 = vadd.f32 %v1393, %v1472
      %v1474 = vpop.f32.mrb[0].mxu0
      %1475 = vdwg.mxu0
      %v1476 = vrot.slane %v1358, 5
      %v1477 = vrot.slane %v1359, 5
      %v1478 = vsel %vm874, %v1476, %v1477
      %v1482 = vsel %vm874, 0.0, %v1476
      %v1483 = vsel %vm874, %v1477, 0.0
      %v1486 = vrot.slane %v1482, 1
      %v1487 = vrot.slane %v1478, 1
      %v1488 = vsel %vm885, %v1486, %v1487
      %v1489 = vrot.slane %v1483, 1
      %v1490 = vsel %vm885, %v1487, %v1489
      %1491 = vrot.lane.b32.xlu0 %v1488, 8
      %v1492 = vpop.permute.xlu0 %1491
      %1493 = vrot.lane.b32.xlu0 %v1490, 8
      %v1494 = vpop.permute.xlu0 %1493
      %v1497 = vrot.slane %v1482, 2
      %v1498 = vrot.slane %v1478, 2
      %v1499 = vsel %vm897, %v1497, %v1498
      %v1500 = vrot.slane %v1483, 2
      %v1501 = vsel %vm897, %v1498, %v1500
      %1502 = vrot.lane.b32.xlu0 %v1499, 16
      %v1503 = vpop.permute.xlu0 %1502
      %1504 = vrot.lane.b32.xlu0 %v1501, 16
      %v1505 = vpop.permute.xlu0 %1504
      %v1508 = vrot.slane %v1482, 3
      %v1509 = vrot.slane %v1478, 3
      %v1510 = vsel %vm909, %v1508, %v1509
      %v1511 = vrot.slane %v1483, 3
      %v1512 = vsel %vm909, %v1509, %v1511
      %1513 = vrot.lane.b32.xlu0 %v1510, 24
      %v1514 = vpop.permute.xlu0 %1513
      %1515 = vrot.lane.b32.xlu0 %v1512, 24
      %v1516 = vpop.permute.xlu0 %1515
      %v1519 = vrot.slane %v1482, 4
      %v1520 = vrot.slane %v1478, 4
      %v1521 = vsel %vm795, %v1519, %v1520
      %v1522 = vrot.slane %v1483, 4
      %v1523 = vsel %vm795, %v1520, %v1522
      %1524 = vrot.lane.b32.xlu0 %v1521, 32
      %v1525 = vpop.permute.xlu0 %1524
      %1526 = vrot.lane.b32.xlu0 %v1523, 32
      %v1527 = vpop.permute.xlu0 %1526
      %v1530 = vrot.slane %v1482, 5
      %v1531 = vrot.slane %v1478, 5
      %v1532 = vsel %vm874, %v1530, %v1531
      %v1533 = vrot.slane %v1483, 5
      %v1534 = vsel %vm874, %v1531, %v1533
      %1535 = vrot.lane.b32.xlu0 %v1532, 40
      %v1536 = vpop.permute.xlu0 %1535
      %1537 = vrot.lane.b32.xlu0 %v1534, 40
      %v1538 = vpop.permute.xlu0 %1537
      %v1541 = vrot.slane %v1482, 6
      %v1542 = vrot.slane %v1478, 6
      %v1543 = vsel %vm943, %v1541, %v1542
      %v1544 = vrot.slane %v1483, 6
      %v1545 = vsel %vm943, %v1542, %v1544
      %1546 = vrot.lane.b32.xlu0 %v1543, 48
      %v1547 = vpop.permute.xlu0 %1546
      %1548 = vrot.lane.b32.xlu0 %v1545, 48
      %v1549 = vpop.permute.xlu0 %1548
      %v1552 = vrot.slane %v1482, 7
      %v1553 = vrot.slane %v1478, 7
      %v1554 = vsel %vm955, %v1552, %v1553
      %v1555 = vrot.slane %v1483, 7
      %v1556 = vsel %vm955, %v1553, %v1555
      %1557 = vrot.lane.b32.xlu0 %v1554, 56
      %v1558 = vpop.permute.xlu0 %1557
      %1559 = vrot.lane.b32.xlu0 %v1556, 56
      %v1560 = vpop.permute.xlu0 %1559
      %v1563 = vsel %vm969, %v1482, %v1492
      %v1564 = vsel %vm969, %v1478, %v1494
      %v1565 = vsel %vm975, %v1563, %v1503
      %v1566 = vsel %vm975, %v1564, %v1505
      %v1567 = vsel %vm981, %v1565, %v1514
      %v1568 = vsel %vm981, %v1566, %v1516
      %v1569 = vsel %vm993, %v1567, %v1525
      %v1570 = vsel %vm993, %v1568, %v1527
      %v1571 = vsel %vm1147, %v1569, %v1536
      %v1572 = vsel %vm1147, %v1570, %v1538
      %vm1573 = vcmask 392192
      %v1574 = vsel %vm1573, %v1571, %v1547
      %v1575 = vsel %vm1573, %v1572, %v1549
      %vm1576 = vcmask 457728
      %v1577 = vsel %vm1576, %v1574, %v1558
      %v1578 = vsel %vm1576, %v1575, %v1560
      %v1580 = vlaneseq
      %v1581 = vshrl.u32 %v1580, 7
      %v1582 = vsub.s32 0, %v1581
      %v1583 = vrot.slane %v1368, %v1582
      %vm1585 = vcmask 523264
      %v1587 = vsel %vm1585, %v1577, 0
      %v1590 = vsel %vm1585, %v1578, 0
      %1592 = vmatprep.subr.mxu0 0.0
      %1593 = vmatpush1.msra.mxu0 %v1360
      %1594 = vmatprep.subr.mxu0 0.0
      %1595 = vmatpush1.msra.mxu0 %v1361
      %1596 = vmatprep.subr.mxu0 0.0
      %1597 = vmatpush1.msra.mxu0 %v1362
      %1598 = vmatprep.subr.mxu0 0.0
      %1599 = vmatpush1.msra.mxu0 %v1363
      %1600 = vmatprep.subr.mxu0 0.0
      %1601 = vmatpush1.msra.mxu0 %v1364
      %1602 = vmatprep.subr.mxu0 0.0
      %1603 = vmatpush1.msra.mxu0 %v1365
      %1604 = vmatprep.subr.mxu0 0.0
      %1605 = vmatpush1.msra.mxu0 %v1366
      %1606 = vmatprep.subr.mxu0 0.0
      %1607 = vmatpush1.msra.mxu0 %v1367
      %1608 = vmatprep.subr.mxu0 0.0
      %1609 = vmatpush1.msra.mxu0 0.0
      %1610 = vmatprep.subr.mxu0 0.0
      %1611 = vmatpush1.msra.mxu0 0.0
      %1612 = vmatprep.subr.mxu0 0.0
      %1613 = vmatpush1.msra.mxu0 0.0
      %1614 = vmatprep.subr.mxu0 0.0
      %1615 = vmatpush1.msra.mxu0 0.0
      %1616 = vmatprep.subr.mxu0 0.0
      %1617 = vmatpush1.msra.mxu0 0.0
      %1618 = vmatprep.subr.mxu0 0.0
      %1619 = vmatpush1.msra.mxu0 0.0
      %1620 = vmatprep.subr.mxu0 0.0
      %1621 = vmatpush1.msra.mxu0 0.0
      %1622 = vmatprep.subr.mxu0 0.0
      %1623 = vmatpush1.msra.mxu0 0.0
      %1624 = vmatprep.subr.mxu0 0.0
      %1625 = vmatpush1.msra.mxu0 0.0
      %1626 = vmatprep.subr.mxu0 0.0
      %1627 = vmatpush1.msra.mxu0 0.0
      %1628 = vmatprep.subr.mxu0 0.0
      %1629 = vmatpush1.msra.mxu0 0.0
      %1630 = vmatprep.subr.mxu0 0.0
      %1631 = vmatpush1.msra.mxu0 0.0
      %1632 = vmatprep.subr.mxu0 0.0
      %1633 = vmatpush1.msra.mxu0 0.0
      %1634 = vmatprep.subr.mxu0 0.0
      %1635 = vmatpush1.msra.mxu0 0.0
      %1636 = vmatprep.subr.mxu0 0.0
      %1637 = vmatpush1.msra.mxu0 0.0
      %1638 = vmatprep.subr.mxu0 0.0
      %1639 = vmatpush1.msra.mxu0 0.0
      %1640 = vmatprep.subr.mxu0 0.0
      %1641 = vmatpush1.msra.mxu0 0.0
      %1642 = vmatprep.subr.mxu0 0.0
      %1643 = vmatpush1.msra.mxu0 0.0
      %1644 = vmatprep.subr.mxu0 0.0
      %1645 = vmatpush1.msra.mxu0 0.0
      %1646 = vmatprep.subr.mxu0 0.0
      %1647 = vmatpush1.msra.mxu0 0.0
      %1648 = vmatprep.subr.mxu0 0.0
      %1649 = vmatpush1.msra.mxu0 0.0
      %1650 = vmatprep.subr.mxu0 0.0
      %1651 = vmatpush1.msra.mxu0 0.0
      %1652 = vmatprep.subr.mxu0 0.0
      %1653 = vmatpush1.msra.mxu0 0.0
      %1654 = vmatprep.subr.mxu0 0.0
      %1655 = vmatpush1.msra.mxu0 0.0
      %1656 = vmatprep.mubr.f32.mxu0 0.0
      %1657 = vmatmul.mubr.f32.gmra.mrb[0].mxu0 %v1587
      %v1658 = vpop.f32.mrb[0].mxu0
      %v1659 = vadd.f32 %v1583, %v1658
      %v1660 = vpop.f32.mrb[0].mxu0
      %1661 = vmatprep.mubr.f32.mxu0 0.0
      %1662 = vmatmul.mubr.f32.gmra.mrb[0].mxu0 %v1590
      %v1663 = vpop.f32.mrb[0].mxu0
      %v1664 = vadd.f32 %v1583, %v1663
      %v1665 = vpop.f32.mrb[0].mxu0
      %1666 = vdwg.mxu0
      %v1667 = vmax.f32 %v1659, 0.0
      %v1668 = vmax.f32 %v1664, 0.0
      %v1671 = vrot.slane %v1667, 6
      %v1672 = vrot.slane %v1668, 6
      %v1673 = vsel %vm943, %v1671, %v1672
      %v1677 = vsel %vm943, 0.0, %v1671
      %v1678 = vsel %vm943, %v1672, 0.0
      %v1681 = vrot.slane %v1677, 1
      %v1682 = vrot.slane %v1673, 1
      %v1683 = vsel %vm885, %v1681, %v1682
      %v1684 = vrot.slane %v1678, 1
      %v1685 = vsel %vm885, %v1682, %v1684
      %1686 = vrot.lane.b32.xlu0 %v1683, 16
      %v1687 = vpop.permute.xlu0 %1686
      %1688 = vrot.lane.b32.xlu0 %v1685, 16
      %v1689 = vpop.permute.xlu0 %1688
      %v1692 = vrot.slane %v1677, 2
      %v1693 = vrot.slane %v1673, 2
      %v1694 = vsel %vm897, %v1692, %v1693
      %v1695 = vrot.slane %v1678, 2
      %v1696 = vsel %vm897, %v1693, %v1695
      %1697 = vrot.lane.b32.xlu0 %v1694, 32
      %v1698 = vpop.permute.xlu0 %1697
      %1699 = vrot.lane.b32.xlu0 %v1696, 32
      %v1700 = vpop.permute.xlu0 %1699
      %v1703 = vrot.slane %v1677, 3
      %v1704 = vrot.slane %v1673, 3
      %v1705 = vsel %vm909, %v1703, %v1704
      %v1706 = vrot.slane %v1678, 3
      %v1707 = vsel %vm909, %v1704, %v1706
      %1708 = vrot.lane.b32.xlu0 %v1705, 48
      %v1709 = vpop.permute.xlu0 %1708
      %1710 = vrot.lane.b32.xlu0 %v1707, 48
      %v1711 = vpop.permute.xlu0 %1710
      %v1714 = vrot.slane %v1677, 4
      %v1715 = vrot.slane %v1673, 4
      %v1716 = vsel %vm795, %v1714, %v1715
      %v1717 = vrot.slane %v1678, 4
      %v1718 = vsel %vm795, %v1715, %v1717
      %1719 = vrot.lane.b32.xlu0 %v1716, 64
      %v1720 = vpop.permute.xlu0 %1719
      %1721 = vrot.lane.b32.xlu0 %v1718, 64
      %v1722 = vpop.permute.xlu0 %1721
      %v1725 = vsel %vm975, %v1677, %v1687
      %v1726 = vsel %vm975, %v1673, %v1689
      %v1727 = vsel %vm993, %v1725, %v1698
      %v1728 = vsel %vm993, %v1726, %v1700
      %v1729 = vsel %vm1573, %v1727, %v1709
      %v1730 = vsel %vm1573, %v1728, %v1711
      %v1731 = vsel %vm1585, %v1729, %v1720
      %v1732 = vsel %vm1585, %v1730, %v1722
      %v1734 = vlaneseq
      %v1735 = vshrl.u32 %v1734, 7
      %v1736 = vsub.s32 0, %v1735
      %v1737 = vrot.slane %v1379, %v1736
      %vm1739 = vcmask 654336
      %v1741 = vsel %vm1739, %v1731, 0
      %v1744 = vsel %vm1739, %v1732, 0
      %1746 = vmatprep.subr.mxu0 0.0
      %1747 = vmatpush1.msra.mxu0 %v1369
      %1748 = vmatprep.subr.mxu0 0.0
      %1749 = vmatpush1.msra.mxu0 %v1370
      %1750 = vmatprep.subr.mxu0 0.0
      %1751 = vmatpush1.msra.mxu0 %v1371
      %1752 = vmatprep.subr.mxu0 0.0
      %1753 = vmatpush1.msra.mxu0 %v1372
      %1754 = vmatprep.subr.mxu0 0.0
      %1755 = vmatpush1.msra.mxu0 %v1373
      %1756 = vmatprep.subr.mxu0 0.0
      %1757 = vmatpush1.msra.mxu0 %v1374
      %1758 = vmatprep.subr.mxu0 0.0
      %1759 = vmatpush1.msra.mxu0 %v1375
      %1760 = vmatprep.subr.mxu0 0.0
      %1761 = vmatpush1.msra.mxu0 %v1376
      %1762 = vmatprep.subr.mxu0 0.0
      %1763 = vmatpush1.msra.mxu0 %v1377
      %1764 = vmatprep.subr.mxu0 0.0
      %1765 = vmatpush1.msra.mxu0 %v1378
      %1766 = vmatprep.subr.mxu0 0.0
      %1767 = vmatpush1.msra.mxu0 0.0
      %1768 = vmatprep.subr.mxu0 0.0
      %1769 = vmatpush1.msra.mxu0 0.0
      %1770 = vmatprep.subr.mxu0 0.0
      %1771 = vmatpush1.msra.mxu0 0.0
      %1772 = vmatprep.subr.mxu0 0.0
      %1773 = vmatpush1.msra.mxu0 0.0
      %1774 = vmatprep.subr.mxu0 0.0
      %1775 = vmatpush1.msra.mxu0 0.0
      %1776 = vmatprep.subr.mxu0 0.0
      %1777 = vmatpush1.msra.mxu0 0.0
      %1778 = vmatprep.subr.mxu0 0.0
      %1779 = vmatpush1.msra.mxu0 0.0
      %1780 = vmatprep.subr.mxu0 0.0
      %1781 = vmatpush1.msra.mxu0 0.0
      %1782 = vmatprep.subr.mxu0 0.0
      %1783 = vmatpush1.msra.mxu0 0.0
      %1784 = vmatprep.subr.mxu0 0.0
      %1785 = vmatpush1.msra.mxu0 0.0
      %1786 = vmatprep.subr.mxu0 0.0
      %1787 = vmatpush1.msra.mxu0 0.0
      %1788 = vmatprep.subr.mxu0 0.0
      %1789 = vmatpush1.msra.mxu0 0.0
      %1790 = vmatprep.subr.mxu0 0.0
      %1791 = vmatpush1.msra.mxu0 0.0
      %1792 = vmatprep.subr.mxu0 0.0
      %1793 = vmatpush1.msra.mxu0 0.0
      %1794 = vmatprep.subr.mxu0 0.0
      %1795 = vmatpush1.msra.mxu0 0.0
      %1796 = vmatprep.subr.mxu0 0.0
      %1797 = vmatpush1.msra.mxu0 0.0
      %1798 = vmatprep.subr.mxu0 0.0
      %1799 = vmatpush1.msra.mxu0 0.0
      %1800 = vmatprep.subr.mxu0 0.0
      %1801 = vmatpush1.msra.mxu0 0.0
      %1802 = vmatprep.subr.mxu0 0.0
      %1803 = vmatpush1.msra.mxu0 0.0
      %1804 = vmatprep.subr.mxu0 0.0
      %1805 = vmatpush1.msra.mxu0 0.0
      %1806 = vmatprep.subr.mxu0 0.0
      %1807 = vmatpush1.msra.mxu0 0.0
      %1808 = vmatprep.subr.mxu0 0.0
      %1809 = vmatpush1.msra.mxu0 0.0
      %1810 = vmatprep.mubr.f32.mxu0 0.0
      %1811 = vmatmul.mubr.f32.gmra.mrb[0].mxu0 %v1741
      %v1812 = vpop.f32.mrb[0].mxu0
      %v1813 = vadd.f32 %v1737, %v1812
      %v1814 = vpop.f32.mrb[0].mxu0
      %1815 = vmatprep.mubr.f32.mxu0 0.0
      %1816 = vmatmul.mubr.f32.gmra.mrb[0].mxu0 %v1744
      %v1817 = vpop.f32.mrb[0].mxu0
      %v1818 = vadd.f32 %v1737, %v1817
      %v1819 = vpop.f32.mrb[0].mxu0
      %1820 = vdwg.mxu0
      %v1821 = vmax.f32 %v1813, 0.0
      %v1822 = vmax.f32 %v1818, 0.0
      %v1825 = vrot.slane %v1821, 7
      %v1826 = vrot.slane %v1822, 7
      %v1827 = vsel %vm955, %v1825, %v1826
      %v1831 = vsel %vm955, 0.0, %v1825
      %v1832 = vsel %vm955, %v1826, 0.0
      %v1835 = vrot.slane %v1831, 1
      %v1836 = vrot.slane %v1827, 1
      %v1837 = vsel %vm885, %v1835, %v1836
      %v1838 = vrot.slane %v1832, 1
      %v1839 = vsel %vm885, %v1836, %v1838
      %1840 = vrot.lane.b32.xlu0 %v1837, 16
      %v1841 = vpop.permute.xlu0 %1840
      %1842 = vrot.lane.b32.xlu0 %v1839, 16
      %v1843 = vpop.permute.xlu0 %1842
      %v1846 = vrot.slane %v1831, 2
      %v1847 = vrot.slane %v1827, 2
      %v1848 = vsel %vm897, %v1846, %v1847
      %v1849 = vrot.slane %v1832, 2
      %v1850 = vsel %vm897, %v1847, %v1849
      %1851 = vrot.lane.b32.xlu0 %v1848, 32
      %v1852 = vpop.permute.xlu0 %1851
      %1853 = vrot.lane.b32.xlu0 %v1850, 32
      %v1854 = vpop.permute.xlu0 %1853
      %v1857 = vsel %vm975, %v1831, %v1841
      %v1858 = vsel %vm975, %v1827, %v1843
      %v1859 = vsel %vm993, %v1857, %v1852
      %v1860 = vsel %vm993, %v1858, %v1854
      %v1862 = vlaneseq
      %v1863 = vshrl.u32 %v1862, 7
      %v1864 = vsub.s32 0, %v1863
      %v1865 = vrot.slane %v1386, %v1864
      %v1868 = vsel %vm1573, %v1859, 0
      %v1871 = vsel %vm1573, %v1860, 0
      %1873 = vmatprep.subr.mxu0 0.0
      %1874 = vmatpush1.msra.mxu0 %v1380
      %1875 = vmatprep.subr.mxu0 0.0
      %1876 = vmatpush1.msra.mxu0 %v1381
      %1877 = vmatprep.subr.mxu0 0.0
      %1878 = vmatpush1.msra.mxu0 %v1382
      %1879 = vmatprep.subr.mxu0 0.0
      %1880 = vmatpush1.msra.mxu0 %v1383
      %1881 = vmatprep.subr.mxu0 0.0
      %1882 = vmatpush1.msra.mxu0 %v1384
      %1883 = vmatprep.subr.mxu0 0.0
      %1884 = vmatpush1.msra.mxu0 %v1385
      %1885 = vmatprep.subr.mxu0 0.0
      %1886 = vmatpush1.msra.mxu0 0.0
      %1887 = vmatprep.subr.mxu0 0.0
      %1888 = vmatpush1.msra.mxu0 0.0
      %1889 = vmatprep.subr.mxu0 0.0
      %1890 = vmatpush1.msra.mxu0 0.0
      %1891 = vmatprep.subr.mxu0 0.0
      %1892 = vmatpush1.msra.mxu0 0.0
      %1893 = vmatprep.subr.mxu0 0.0
      %1894 = vmatpush1.msra.mxu0 0.0
      %1895 = vmatprep.subr.mxu0 0.0
      %1896 = vmatpush1.msra.mxu0 0.0
      %1897 = vmatprep.subr.mxu0 0.0
      %1898 = vmatpush1.msra.mxu0 0.0
      %1899 = vmatprep.subr.mxu0 0.0
      %1900 = vmatpush1.msra.mxu0 0.0
      %1901 = vmatprep.subr.mxu0 0.0
      %1902 = vmatpush1.msra.mxu0 0.0
      %1903 = vmatprep.subr.mxu0 0.0
      %1904 = vmatpush1.msra.mxu0 0.0
      %1905 = vmatprep.subr.mxu0 0.0
      %1906 = vmatpush1.msra.mxu0 0.0
      %1907 = vmatprep.subr.mxu0 0.0
      %1908 = vmatpush1.msra.mxu0 0.0
      %1909 = vmatprep.subr.mxu0 0.0
      %1910 = vmatpush1.msra.mxu0 0.0
      %1911 = vmatprep.subr.mxu0 0.0
      %1912 = vmatpush1.msra.mxu0 0.0
      %1913 = vmatprep.subr.mxu0 0.0
      %1914 = vmatpush1.msra.mxu0 0.0
      %1915 = vmatprep.subr.mxu0 0.0
      %1916 = vmatpush1.msra.mxu0 0.0
      %1917 = vmatprep.subr.mxu0 0.0
      %1918 = vmatpush1.msra.mxu0 0.0
      %1919 = vmatprep.subr.mxu0 0.0
      %1920 = vmatpush1.msra.mxu0 0.0
      %1921 = vmatprep.subr.mxu0 0.0
      %1922 = vmatpush1.msra.mxu0 0.0
      %1923 = vmatprep.subr.mxu0 0.0
      %1924 = vmatpush1.msra.mxu0 0.0
      %1925 = vmatprep.subr.mxu0 0.0
      %1926 = vmatpush1.msra.mxu0 0.0
      %1927 = vmatprep.subr.mxu0 0.0
      %1928 = vmatpush1.msra.mxu0 0.0
      %1929 = vmatprep.subr.mxu0 0.0
      %1930 = vmatpush1.msra.mxu0 0.0
      %1931 = vmatprep.subr.mxu0 0.0
      %1932 = vmatpush1.msra.mxu0 0.0
      %1933 = vmatprep.subr.mxu0 0.0
      %1934 = vmatpush1.msra.mxu0 0.0
      %1935 = vmatprep.subr.mxu0 0.0
      %1936 = vmatpush1.msra.mxu0 0.0
      %1937 = vmatprep.mubr.f32.mxu0 0.0
      %1938 = vmatmul.mubr.f32.gmra.mrb[0].mxu0 %v1868
      %v1939 = vpop.f32.mrb[0].mxu0
      %v1940 = vadd.f32 %v1865, %v1939
      %v1941 = vpop.f32.mrb[0].mxu0
      %1942 = vmatprep.mubr.f32.mxu0 0.0
      %1943 = vmatmul.mubr.f32.gmra.mrb[0].mxu0 %v1871
      %v1944 = vpop.f32.mrb[0].mxu0
      %v1945 = vadd.f32 %v1865, %v1944
      %v1946 = vpop.f32.mrb[0].mxu0
      %1947 = vdwg.mxu0
      %v1948 = vadd.f32 %v1940, %v1468
      %v1949 = vadd.f32 %v1945, %v1473
      %v1950 = vmax.f32 %v1948, 0.0
      %v1951 = vmax.f32 %v1949, 0.0
      %v1952 = vld [vmem:[%s17] sm:$0xff]
      %v1953 = vld [vmem:[%s17 + $0x8] sm:$0xff]
      %v1954 = vld [vmem:[%s17 + $0x10] sm:$0xff]
      %v1955 = vld [vmem:[%s17 + $0x18] sm:$0xff]
      %v1956 = vld [vmem:[%s17 + $0x20] sm:$0xff]
      %v1957 = vld [vmem:[%s17 + $0x28] sm:$0xff]
      %v1958 = vld [vmem:[%s17 + $0x30] sm:$0xff]
      %v1959 = vld [vmem:[%s17 + $0x38] sm:$0xff]
      %v1960 = vld [vmem:[%s17 + $0x40] sm:$0xff]
      %v1961 = vld [vmem:[%s17 + $0x48] sm:$0xff]
      %v1962 = vld [vmem:[%s17 + $0x50] sm:$0xff]
      %v1963 = vld [vmem:[%s17 + $0x58] sm:$0xff]
      %v1964 = vld [vmem:[%s17 + $0x60] sm:$0xff]
      %v1965 = vld [vmem:[%s17 + $0x68] sm:$0xff]
      %v1966 = vld [vmem:[%s17 + $0x70] sm:$0xff]
      %v1967 = vld [vmem:[%s17 + $0x78] sm:$0xff]
      %v1968 = vld [vmem:[%s18] sm:$0x1]
      %v1969 = vld [vmem:[%s19] sm:$0xff]
      %v1970 = vld [vmem:[%s19 + $0x8] sm:$0xff]
      %v1971 = vld [vmem:[%s19 + $0x10] sm:$0xff]
      %v1972 = vld [vmem:[%s19 + $0x18] sm:$0xff]
      %v1973 = vld [vmem:[%s19 + $0x20] sm:$0xff]
      %v1974 = vld [vmem:[%s19 + $0x28] sm:$0xff]
      %v1975 = vld [vmem:[%s19 + $0x30] sm:$0xff]
      %v1976 = vld [vmem:[%s19 + $0x38] sm:$0xff]
      %v1977 = vld [vmem:[%s19 + $0x40] sm:$0xff]
      %v1978 = vld [vmem:[%s19 + $0x48] sm:$0xff]
      %v1979 = vld [vmem:[%s20] sm:$0x1]
      %v1980 = vld [vmem:[%s21] sm:$0xff]
      %v1981 = vld [vmem:[%s21 + $0x8] sm:$0xff]
      %v1982 = vld [vmem:[%s21 + $0x10] sm:$0xff]
      %v1983 = vld [vmem:[%s21 + $0x18] sm:$0xff]
      %v1984 = vld [vmem:[%s21 + $0x20] sm:$0xff]
      %v1985 = vld [vmem:[%s21 + $0x28] sm:$0xff]
      %v1986 = vld [vmem:[%s22] sm:$0x1]
      %v1987 = vld [vmem:[%s23] sm:$0xff]
      %v1988 = vld [vmem:[%s23 + $0x8] sm:$0xff]
      %v1989 = vld [vmem:[%s24] sm:$0x1]
      %v1991 = vlaneseq
      %v1992 = vshrl.u32 %v1991, 7
      %v1993 = vsub.s32 0, %v1992
      %v1994 = vrot.slane %v1989, %v1993
      %v1997 = vsel %vm975, %v1950, 0
      %v2000 = vsel %vm975, %v1951, 0
      %2002 = vmatprep.subr.mxu0 0.0
      %2003 = vmatpush1.msra.mxu0 %v1987
      %2004 = vmatprep.subr.mxu0 0.0
      %2005 = vmatpush1.msra.mxu0 %v1988
      %2006 = vmatprep.subr.mxu0 0.0
      %2007 = vmatpush1.msra.mxu0 0.0
      %2008 = vmatprep.subr.mxu0 0.0
      %2009 = vmatpush1.msra.mxu0 0.0
      %2010 = vmatprep.subr.mxu0 0.0
      %2011 = vmatpush1.msra.mxu0 0.0
      %2012 = vmatprep.subr.mxu0 0.0
      %2013 = vmatpush1.msra.mxu0 0.0
      %2014 = vmatprep.subr.mxu0 0.0
      %2015 = vmatpush1.msra.mxu0 0.0
      %2016 = vmatprep.subr.mxu0 0.0
      %2017 = vmatpush1.msra.mxu0 0.0
      %2018 = vmatprep.subr.mxu0 0.0
      %2019 = vmatpush1.msra.mxu0 0.0
      %2020 = vmatprep.subr.mxu0 0.0
      %2021 = vmatpush1.msra.mxu0 0.0
      %2022 = vmatprep.subr.mxu0 0.0
      %2023 = vmatpush1.msra.mxu0 0.0
      %2024 = vmatprep.subr.mxu0 0.0
      %2025 = vmatpush1.msra.mxu0 0.0
      %2026 = vmatprep.subr.mxu0 0.0
      %2027 = vmatpush1.msra.mxu0 0.0
      %2028 = vmatprep.subr.mxu0 0.0
      %2029 = vmatpush1.msra.mxu0 0.0
      %2030 = vmatprep.subr.mxu0 0.0
      %2031 = vmatpush1.msra.mxu0 0.0
      %2032 = vmatprep.subr.mxu0 0.0
      %2033 = vmatpush1.msra.mxu0 0.0
      %2034 = vmatprep.subr.mxu0 0.0
      %2035 = vmatpush1.msra.mxu0 0.0
      %2036 = vmatprep.subr.mxu0 0.0
      %2037 = vmatpush1.msra.mxu0 0.0
      %2038 = vmatprep.subr.mxu0 0.0
      %2039 = vmatpush1.msra.mxu0 0.0
      %2040 = vmatprep.subr.mxu0 0.0
      %2041 = vmatpush1.msra.mxu0 0.0
      %2042 = vmatprep.subr.mxu0 0.0
      %2043 = vmatpush1.msra.mxu0 0.0
      %2044 = vmatprep.subr.mxu0 0.0
      %2045 = vmatpush1.msra.mxu0 0.0
      %2046 = vmatprep.subr.mxu0 0.0
      %2047 = vmatpush1.msra.mxu0 0.0
      %2048 = vmatprep.subr.mxu0 0.0
      %2049 = vmatpush1.msra.mxu0 0.0
      %2050 = vmatprep.subr.mxu0 0.0
      %2051 = vmatpush1.msra.mxu0 0.0
      %2052 = vmatprep.subr.mxu0 0.0
      %2053 = vmatpush1.msra.mxu0 0.0
      %2054 = vmatprep.subr.mxu0 0.0
      %2055 = vmatpush1.msra.mxu0 0.0
      %2056 = vmatprep.subr.mxu0 0.0
      %2057 = vmatpush1.msra.mxu0 0.0
      %2058 = vmatprep.subr.mxu0 0.0
      %2059 = vmatpush1.msra.mxu0 0.0
      %2060 = vmatprep.subr.mxu0 0.0
      %2061 = vmatpush1.msra.mxu0 0.0
      %2062 = vmatprep.subr.mxu0 0.0
      %2063 = vmatpush1.msra.mxu0 0.0
      %2064 = vmatprep.subr.mxu0 0.0
      %2065 = vmatpush1.msra.mxu0 0.0
      %2066 = vmatprep.mubr.f32.mxu0 0.0
      %2067 = vmatmul.mubr.f32.gmra.mrb[0].mxu0 %v1997
      %v2068 = vpop.f32.mrb[0].mxu0
      %v2069 = vadd.f32 %v1994, %v2068
      %v2070 = vpop.f32.mrb[0].mxu0
      %2071 = vmatprep.mubr.f32.mxu0 0.0
      %2072 = vmatmul.mubr.f32.gmra.mrb[0].mxu0 %v2000
      %v2073 = vpop.f32.mrb[0].mxu0
      %v2074 = vadd.f32 %v1994, %v2073
      %v2075 = vpop.f32.mrb[0].mxu0
      %2076 = vdwg.mxu0
      %v2077 = vrot.slane %v1950, 5
      %v2078 = vrot.slane %v1951, 5
      %v2079 = vsel %vm874, %v2077, %v2078
      %v2083 = vsel %vm874, 0.0, %v2077
      %v2084 = vsel %vm874, %v2078, 0.0
      %v2087 = vrot.slane %v2083, 1
      %v2088 = vrot.slane %v2079, 1
      %v2089 = vsel %vm885, %v2087, %v2088
      %v2090 = vrot.slane %v2084, 1
      %v2091 = vsel %vm885, %v2088, %v2090
      %2092 = vrot.lane.b32.xlu0 %v2089, 16
      %v2093 = vpop.permute.xlu0 %2092
      %2094 = vrot.lane.b32.xlu0 %v2091, 16
      %v2095 = vpop.permute.xlu0 %2094
      %v2098 = vrot.slane %v2083, 2
      %v2099 = vrot.slane %v2079, 2
      %v2100 = vsel %vm897, %v2098, %v2099
      %v2101 = vrot.slane %v2084, 2
      %v2102 = vsel %vm897, %v2099, %v2101
      %2103 = vrot.lane.b32.xlu0 %v2100, 32
      %v2104 = vpop.permute.xlu0 %2103
      %2105 = vrot.lane.b32.xlu0 %v2102, 32
      %v2106 = vpop.permute.xlu0 %2105
      %v2109 = vrot.slane %v2083, 3
      %v2110 = vrot.slane %v2079, 3
      %v2111 = vsel %vm909, %v2109, %v2110
      %v2112 = vrot.slane %v2084, 3
      %v2113 = vsel %vm909, %v2110, %v2112
      %2114 = vrot.lane.b32.xlu0 %v2111, 48
      %v2115 = vpop.permute.xlu0 %2114
      %2116 = vrot.lane.b32.xlu0 %v2113, 48
      %v2117 = vpop.permute.xlu0 %2116
      %v2120 = vrot.slane %v2083, 4
      %v2121 = vrot.slane %v2079, 4
      %v2122 = vsel %vm795, %v2120, %v2121
      %v2123 = vrot.slane %v2084, 4
      %v2124 = vsel %vm795, %v2121, %v2123
      %2125 = vrot.lane.b32.xlu0 %v2122, 64
      %v2126 = vpop.permute.xlu0 %2125
      %2127 = vrot.lane.b32.xlu0 %v2124, 64
      %v2128 = vpop.permute.xlu0 %2127
      %v2131 = vrot.slane %v2083, 5
      %v2132 = vrot.slane %v2079, 5
      %v2133 = vsel %vm874, %v2131, %v2132
      %v2134 = vrot.slane %v2084, 5
      %v2135 = vsel %vm874, %v2132, %v2134
      %2136 = vrot.lane.b32.xlu0 %v2133, 80
      %v2137 = vpop.permute.xlu0 %2136
      %2138 = vrot.lane.b32.xlu0 %v2135, 80
      %v2139 = vpop.permute.xlu0 %2138
      %v2142 = vrot.slane %v2083, 6
      %v2143 = vrot.slane %v2079, 6
      %v2144 = vsel %vm943, %v2142, %v2143
      %v2145 = vrot.slane %v2084, 6
      %v2146 = vsel %vm943, %v2143, %v2145
      %2147 = vrot.lane.b32.xlu0 %v2144, 96
      %v2148 = vpop.permute.xlu0 %2147
      %2149 = vrot.lane.b32.xlu0 %v2146, 96
      %v2150 = vpop.permute.xlu0 %2149
      %v2153 = vrot.slane %v2083, 7
      %v2154 = vrot.slane %v2079, 7
      %v2155 = vsel %vm955, %v2153, %v2154
      %v2156 = vrot.slane %v2084, 7
      %v2157 = vsel %vm955, %v2154, %v2156
      %2158 = vrot.lane.b32.xlu0 %v2155, 112
      %v2159 = vpop.permute.xlu0 %2158
      %2160 = vrot.lane.b32.xlu0 %v2157, 112
      %v2161 = vpop.permute.xlu0 %2160
      %v2164 = vsel %vm975, %v2083, %v2093
      %v2165 = vsel %vm975, %v2079, %v2095
      %v2166 = vsel %vm993, %v2164, %v2104
      %v2167 = vsel %vm993, %v2165, %v2106
      %v2168 = vsel %vm1573, %v2166, %v2115
      %v2169 = vsel %vm1573, %v2167, %v2117
      %v2170 = vsel %vm1585, %v2168, %v2126
      %v2171 = vsel %vm1585, %v2169, %v2128
      %v2172 = vsel %vm1739, %v2170, %v2137
      %v2173 = vsel %vm1739, %v2171, %v2139
      %vm2174 = vcmask 785408
      %v2175 = vsel %vm2174, %v2172, %v2148
      %v2176 = vsel %vm2174, %v2173, %v2150
      %vm2177 = vcmask 916480
      %v2178 = vsel %vm2177, %v2175, %v2159
      %v2179 = vsel %vm2177, %v2176, %v2161
      %v2181 = vlaneseq
      %v2182 = vshrl.u32 %v2181, 7
      %v2183 = vsub.s32 0, %v2182
      %v2184 = vrot.slane %v1968, %v2183
      %2186 = vmatprep.subr.mxu0 0.0
      %2187 = vmatpush1.msra.mxu0 %v1952
      %2188 = vmatprep.subr.mxu0 0.0
      %2189 = vmatpush1.msra.mxu0 %v1953
      %2190 = vmatprep.subr.mxu0 0.0
      %2191 = vmatpush1.msra.mxu0 %v1954
      %2192 = vmatprep.subr.mxu0 0.0
      %2193 = vmatpush1.msra.mxu0 %v1955
      %2194 = vmatprep.subr.mxu0 0.0
      %2195 = vmatpush1.msra.mxu0 %v1956
      %2196 = vmatprep.subr.mxu0 0.0
      %2197 = vmatpush1.msra.mxu0 %v1957
      %2198 = vmatprep.subr.mxu0 0.0
      %2199 = vmatpush1.msra.mxu0 %v1958
      %2200 = vmatprep.subr.mxu0 0.0
      %2201 = vmatpush1.msra.mxu0 %v1959
      %2202 = vmatprep.subr.mxu0 0.0
      %2203 = vmatpush1.msra.mxu0 %v1960
      %2204 = vmatprep.subr.mxu0 0.0
      %2205 = vmatpush1.msra.mxu0 %v1961
      %2206 = vmatprep.subr.mxu0 0.0
      %2207 = vmatpush1.msra.mxu0 %v1962
      %2208 = vmatprep.subr.mxu0 0.0
      %2209 = vmatpush1.msra.mxu0 %v1963
      %2210 = vmatprep.subr.mxu0 0.0
      %2211 = vmatpush1.msra.mxu0 %v1964
      %2212 = vmatprep.subr.mxu0 0.0
      %2213 = vmatpush1.msra.mxu0 %v1965
      %2214 = vmatprep.subr.mxu0 0.0
      %2215 = vmatpush1.msra.mxu0 %v1966
      %2216 = vmatprep.subr.mxu0 0.0
      %2217 = vmatpush1.msra.mxu0 %v1967
      %2218 = vmatprep.subr.mxu0 0.0
      %2219 = vmatpush1.msra.mxu0 0.0
      %2220 = vmatprep.subr.mxu0 0.0
      %2221 = vmatpush1.msra.mxu0 0.0
      %2222 = vmatprep.subr.mxu0 0.0
      %2223 = vmatpush1.msra.mxu0 0.0
      %2224 = vmatprep.subr.mxu0 0.0
      %2225 = vmatpush1.msra.mxu0 0.0
      %2226 = vmatprep.subr.mxu0 0.0
      %2227 = vmatpush1.msra.mxu0 0.0
      %2228 = vmatprep.subr.mxu0 0.0
      %2229 = vmatpush1.msra.mxu0 0.0
      %2230 = vmatprep.subr.mxu0 0.0
      %2231 = vmatpush1.msra.mxu0 0.0
      %2232 = vmatprep.subr.mxu0 0.0
      %2233 = vmatpush1.msra.mxu0 0.0
      %2234 = vmatprep.subr.mxu0 0.0
      %2235 = vmatpush1.msra.mxu0 0.0
      %2236 = vmatprep.subr.mxu0 0.0
      %2237 = vmatpush1.msra.mxu0 0.0
      %2238 = vmatprep.subr.mxu0 0.0
      %2239 = vmatpush1.msra.mxu0 0.0
      %2240 = vmatprep.subr.mxu0 0.0
      %2241 = vmatpush1.msra.mxu0 0.0
      %2242 = vmatprep.subr.mxu0 0.0
      %2243 = vmatpush1.msra.mxu0 0.0
      %2244 = vmatprep.subr.mxu0 0.0
      %2245 = vmatpush1.msra.mxu0 0.0
      %2246 = vmatprep.subr.mxu0 0.0
      %2247 = vmatpush1.msra.mxu0 0.0
      %2248 = vmatprep.subr.mxu0 0.0
      %2249 = vmatpush1.msra.mxu0 0.0
      %2250 = vmatprep.mubr.f32.mxu0 0.0
      %2251 = vmatmul.mubr.f32.gmra.mrb[0].mxu0 %v2178
      %v2252 = vpop.f32.mrb[0].mxu0
      %v2253 = vadd.f32 %v2184, %v2252
      %v2254 = vpop.f32.mrb[0].mxu0
      %2255 = vmatprep.mubr.f32.mxu0 0.0
      %2256 = vmatmul.mubr.f32.gmra.mrb[0].mxu0 %v2179
      %v2257 = vpop.f32.mrb[0].mxu0
      %v2258 = vadd.f32 %v2184, %v2257
      %v2259 = vpop.f32.mrb[0].mxu0
      %2260 = vdwg.mxu0
      %v2261 = vmax.f32 %v2253, 0.0
      %v2262 = vmax.f32 %v2258, 0.0
      %v2265 = vrot.slane %v2261, 6
      %v2266 = vrot.slane %v2262, 6
      %v2267 = vsel %vm943, %v2265, %v2266
      %v2271 = vsel %vm943, 0.0, %v2265
      %v2272 = vsel %vm943, %v2266, 0.0
      %v2275 = vrot.slane %v2271, 1
      %v2276 = vrot.slane %v2267, 1
      %v2277 = vsel %vm885, %v2275, %v2276
      %v2278 = vrot.slane %v2272, 1
      %v2279 = vsel %vm885, %v2276, %v2278
      %2280 = vrot.lane.b32.xlu0 %v2277, 16
      %v2281 = vpop.permute.xlu0 %2280
      %2282 = vrot.lane.b32.xlu0 %v2279, 16
      %v2283 = vpop.permute.xlu0 %2282
      %v2286 = vrot.slane %v2271, 2
      %v2287 = vrot.slane %v2267, 2
      %v2288 = vsel %vm897, %v2286, %v2287
      %v2289 = vrot.slane %v2272, 2
      %v2290 = vsel %vm897, %v2287, %v2289
      %2291 = vrot.lane.b32.xlu0 %v2288, 32
      %v2292 = vpop.permute.xlu0 %2291
      %2293 = vrot.lane.b32.xlu0 %v2290, 32
      %v2294 = vpop.permute.xlu0 %2293
      %v2297 = vrot.slane %v2271, 3
      %v2298 = vrot.slane %v2267, 3
      %v2299 = vsel %vm909, %v2297, %v2298
      %v2300 = vrot.slane %v2272, 3
      %v2301 = vsel %vm909, %v2298, %v2300
      %2302 = vrot.lane.b32.xlu0 %v2299, 48
      %v2303 = vpop.permute.xlu0 %2302
      %2304 = vrot.lane.b32.xlu0 %v2301, 48
      %v2305 = vpop.permute.xlu0 %2304
      %v2308 = vrot.slane %v2271, 4
      %v2309 = vrot.slane %v2267, 4
      %v2310 = vsel %vm795, %v2308, %v2309
      %v2311 = vrot.slane %v2272, 4
      %v2312 = vsel %vm795, %v2309, %v2311
      %2313 = vrot.lane.b32.xlu0 %v2310, 64
      %v2314 = vpop.permute.xlu0 %2313
      %2315 = vrot.lane.b32.xlu0 %v2312, 64
      %v2316 = vpop.permute.xlu0 %2315
      %v2319 = vsel %vm975, %v2271, %v2281
      %v2320 = vsel %vm975, %v2267, %v2283
      %v2321 = vsel %vm993, %v2319, %v2292
      %v2322 = vsel %vm993, %v2320, %v2294
      %v2323 = vsel %vm1573, %v2321, %v2303
      %v2324 = vsel %vm1573, %v2322, %v2305
      %v2325 = vsel %vm1585, %v2323, %v2314
      %v2326 = vsel %vm1585, %v2324, %v2316
      %v2328 = vlaneseq
      %v2329 = vshrl.u32 %v2328, 7
      %v2330 = vsub.s32 0, %v2329
      %v2331 = vrot.slane %v1979, %v2330
      %v2334 = vsel %vm1739, %v2325, 0
      %v2337 = vsel %vm1739, %v2326, 0
      %2339 = vmatprep.subr.mxu0 0.0
      %2340 = vmatpush1.msra.mxu0 %v1969
      %2341 = vmatprep.subr.mxu0 0.0
      %2342 = vmatpush1.msra.mxu0 %v1970
      %2343 = vmatprep.subr.mxu0 0.0
      %2344 = vmatpush1.msra.mxu0 %v1971
      %2345 = vmatprep.subr.mxu0 0.0
      %2346 = vmatpush1.msra.mxu0 %v1972
      %2347 = vmatprep.subr.mxu0 0.0
      %2348 = vmatpush1.msra.mxu0 %v1973
      %2349 = vmatprep.subr.mxu0 0.0
      %2350 = vmatpush1.msra.mxu0 %v1974
      %2351 = vmatprep.subr.mxu0 0.0
      %2352 = vmatpush1.msra.mxu0 %v1975
      %2353 = vmatprep.subr.mxu0 0.0
      %2354 = vmatpush1.msra.mxu0 %v1976
      %2355 = vmatprep.subr.mxu0 0.0
      %2356 = vmatpush1.msra.mxu0 %v1977
      %2357 = vmatprep.subr.mxu0 0.0
      %2358 = vmatpush1.msra.mxu0 %v1978
      %2359 = vmatprep.subr.mxu0 0.0
      %2360 = vmatpush1.msra.mxu0 0.0
      %2361 = vmatprep.subr.mxu0 0.0
      %2362 = vmatpush1.msra.mxu0 0.0
      %2363 = vmatprep.subr.mxu0 0.0
      %2364 = vmatpush1.msra.mxu0 0.0
      %2365 = vmatprep.subr.mxu0 0.0
      %2366 = vmatpush1.msra.mxu0 0.0
      %2367 = vmatprep.subr.mxu0 0.0
      %2368 = vmatpush1.msra.mxu0 0.0
      %2369 = vmatprep.subr.mxu0 0.0
      %2370 = vmatpush1.msra.mxu0 0.0
      %2371 = vmatprep.subr.mxu0 0.0
      %2372 = vmatpush1.msra.mxu0 0.0
      %2373 = vmatprep.subr.mxu0 0.0
      %2374 = vmatpush1.msra.mxu0 0.0
      %2375 = vmatprep.subr.mxu0 0.0
      %2376 = vmatpush1.msra.mxu0 0.0
      %2377 = vmatprep.subr.mxu0 0.0
      %2378 = vmatpush1.msra.mxu0 0.0
      %2379 = vmatprep.subr.mxu0 0.0
      %2380 = vmatpush1.msra.mxu0 0.0
      %2381 = vmatprep.subr.mxu0 0.0
      %2382 = vmatpush1.msra.mxu0 0.0
      %2383 = vmatprep.subr.mxu0 0.0
      %2384 = vmatpush1.msra.mxu0 0.0
      %2385 = vmatprep.subr.mxu0 0.0
      %2386 = vmatpush1.msra.mxu0 0.0
      %2387 = vmatprep.subr.mxu0 0.0
      %2388 = vmatpush1.msra.mxu0 0.0
      %2389 = vmatprep.subr.mxu0 0.0
      %2390 = vmatpush1.msra.mxu0 0.0
      %2391 = vmatprep.subr.mxu0 0.0
      %2392 = vmatpush1.msra.mxu0 0.0
      %2393 = vmatprep.subr.mxu0 0.0
      %2394 = vmatpush1.msra.mxu0 0.0
      %2395 = vmatprep.subr.mxu0 0.0
      %2396 = vmatpush1.msra.mxu0 0.0
      %2397 = vmatprep.subr.mxu0 0.0
      %2398 = vmatpush1.msra.mxu0 0.0
      %2399 = vmatprep.subr.mxu0 0.0
      %2400 = vmatpush1.msra.mxu0 0.0
      %2401 = vmatprep.subr.mxu0 0.0
      %2402 = vmatpush1.msra.mxu0 0.0
      %2403 = vmatprep.mubr.f32.mxu0 0.0
      %2404 = vmatmul.mubr.f32.gmra.mrb[0].mxu0 %v2334
      %v2405 = vpop.f32.mrb[0].mxu0
      %v2406 = vadd.f32 %v2331, %v2405
      %v2407 = vpop.f32.mrb[0].mxu0
      %2408 = vmatprep.mubr.f32.mxu0 0.0
      %2409 = vmatmul.mubr.f32.gmra.mrb[0].mxu0 %v2337
      %v2410 = vpop.f32.mrb[0].mxu0
      %v2411 = vadd.f32 %v2331, %v2410
      %v2412 = vpop.f32.mrb[0].mxu0
      %2413 = vdwg.mxu0
      %v2414 = vmax.f32 %v2406, 0.0
      %v2415 = vmax.f32 %v2411, 0.0
      %v2418 = vrot.slane %v2414, 7
      %v2419 = vrot.slane %v2415, 7
      %v2420 = vsel %vm955, %v2418, %v2419
      %v2424 = vsel %vm955, 0.0, %v2418
      %v2425 = vsel %vm955, %v2419, 0.0
      %v2428 = vrot.slane %v2424, 1
      %v2429 = vrot.slane %v2420, 1
      %v2430 = vsel %vm885, %v2428, %v2429
      %v2431 = vrot.slane %v2425, 1
      %v2432 = vsel %vm885, %v2429, %v2431
      %2433 = vrot.lane.b32.xlu0 %v2430, 16
      %v2434 = vpop.permute.xlu0 %2433
      %2435 = vrot.lane.b32.xlu0 %v2432, 16
      %v2436 = vpop.permute.xlu0 %2435
      %v2439 = vrot.slane %v2424, 2
      %v2440 = vrot.slane %v2420, 2
      %v2441 = vsel %vm897, %v2439, %v2440
      %v2442 = vrot.slane %v2425, 2
      %v2443 = vsel %vm897, %v2440, %v2442
      %2444 = vrot.lane.b32.xlu0 %v2441, 32
      %v2445 = vpop.permute.xlu0 %2444
      %2446 = vrot.lane.b32.xlu0 %v2443, 32
      %v2447 = vpop.permute.xlu0 %2446
      %v2450 = vsel %vm975, %v2424, %v2434
      %v2451 = vsel %vm975, %v2420, %v2436
      %v2452 = vsel %vm993, %v2450, %v2445
      %v2453 = vsel %vm993, %v2451, %v2447
      %v2455 = vlaneseq
      %v2456 = vshrl.u32 %v2455, 7
      %v2457 = vsub.s32 0, %v2456
      %v2458 = vrot.slane %v1986, %v2457
      %v2461 = vsel %vm1573, %v2452, 0
      %v2464 = vsel %vm1573, %v2453, 0
      %2466 = vmatprep.subr.mxu0 0.0
      %2467 = vmatpush1.msra.mxu0 %v1980
      %2468 = vmatprep.subr.mxu0 0.0
      %2469 = vmatpush1.msra.mxu0 %v1981
      %2470 = vmatprep.subr.mxu0 0.0
      %2471 = vmatpush1.msra.mxu0 %v1982
      %2472 = vmatprep.subr.mxu0 0.0
      %2473 = vmatpush1.msra.mxu0 %v1983
      %2474 = vmatprep.subr.mxu0 0.0
      %2475 = vmatpush1.msra.mxu0 %v1984
      %2476 = vmatprep.subr.mxu0 0.0
      %2477 = vmatpush1.msra.mxu0 %v1985
      %2478 = vmatprep.subr.mxu0 0.0
      %2479 = vmatpush1.msra.mxu0 0.0
      %2480 = vmatprep.subr.mxu0 0.0
      %2481 = vmatpush1.msra.mxu0 0.0
      %2482 = vmatprep.subr.mxu0 0.0
      %2483 = vmatpush1.msra.mxu0 0.0
      %2484 = vmatprep.subr.mxu0 0.0
      %2485 = vmatpush1.msra.mxu0 0.0
      %2486 = vmatprep.subr.mxu0 0.0
      %2487 = vmatpush1.msra.mxu0 0.0
      %2488 = vmatprep.subr.mxu0 0.0
      %2489 = vmatpush1.msra.mxu0 0.0
      %2490 = vmatprep.subr.mxu0 0.0
      %2491 = vmatpush1.msra.mxu0 0.0
      %2492 = vmatprep.subr.mxu0 0.0
      %2493 = vmatpush1.msra.mxu0 0.0
      %2494 = vmatprep.subr.mxu0 0.0
      %2495 = vmatpush1.msra.mxu0 0.0
      %2496 = vmatprep.subr.mxu0 0.0
      %2497 = vmatpush1.msra.mxu0 0.0
      %2498 = vmatprep.subr.mxu0 0.0
      %2499 = vmatpush1.msra.mxu0 0.0
      %2500 = vmatprep.subr.mxu0 0.0
      %2501 = vmatpush1.msra.mxu0 0.0
      %2502 = vmatprep.subr.mxu0 0.0
      %2503 = vmatpush1.msra.mxu0 0.0
      %2504 = vmatprep.subr.mxu0 0.0
      %2505 = vmatpush1.msra.mxu0 0.0
      %2506 = vmatprep.subr.mxu0 0.0
      %2507 = vmatpush1.msra.mxu0 0.0
      %2508 = vmatprep.subr.mxu0 0.0
      %2509 = vmatpush1.msra.mxu0 0.0
      %2510 = vmatprep.subr.mxu0 0.0
      %2511 = vmatpush1.msra.mxu0 0.0
      %2512 = vmatprep.subr.mxu0 0.0
      %2513 = vmatpush1.msra.mxu0 0.0
      %2514 = vmatprep.subr.mxu0 0.0
      %2515 = vmatpush1.msra.mxu0 0.0
      %2516 = vmatprep.subr.mxu0 0.0
      %2517 = vmatpush1.msra.mxu0 0.0
      %2518 = vmatprep.subr.mxu0 0.0
      %2519 = vmatpush1.msra.mxu0 0.0
      %2520 = vmatprep.subr.mxu0 0.0
      %2521 = vmatpush1.msra.mxu0 0.0
      %2522 = vmatprep.subr.mxu0 0.0
      %2523 = vmatpush1.msra.mxu0 0.0
      %2524 = vmatprep.subr.mxu0 0.0
      %2525 = vmatpush1.msra.mxu0 0.0
      %2526 = vmatprep.subr.mxu0 0.0
      %2527 = vmatpush1.msra.mxu0 0.0
      %2528 = vmatprep.subr.mxu0 0.0
      %2529 = vmatpush1.msra.mxu0 0.0
      %2530 = vmatprep.mubr.f32.mxu0 0.0
      %2531 = vmatmul.mubr.f32.gmra.mrb[0].mxu0 %v2461
      %v2532 = vpop.f32.mrb[0].mxu0
      %v2533 = vadd.f32 %v2458, %v2532
      %v2534 = vpop.f32.mrb[0].mxu0
      %2535 = vmatprep.mubr.f32.mxu0 0.0
      %2536 = vmatmul.mubr.f32.gmra.mrb[0].mxu0 %v2464
      %v2537 = vpop.f32.mrb[0].mxu0
      %v2538 = vadd.f32 %v2458, %v2537
      %v2539 = vpop.f32.mrb[0].mxu0
      %2540 = vdwg.mxu0
      %v2541 = vadd.f32 %v2533, %v2069
      %v2542 = vadd.f32 %v2538, %v2074
      %v2543 = vmax.f32 %v2541, 0.0
      %v2544 = vmax.f32 %v2542, 0.0
      %v2545 = vsel %vm975, %v1950, 0.0
      %v2546 = vsel %vm975, %v1951, 0.0
      %v2547 = vadd.f32 %v2545, %v2546
      %v2548 = vrot.slane %v2547, 4
      %v2549 = vadd.f32 %v2547, %v2548
      %v2550 = vrot.slane %v2549, 2
      %v2551 = vadd.f32 %v2549, %v2550
      %v2552 = vrot.slane %v2551, 1
      %v2553 = vadd.f32 %v2551, %v2552
      %v2554 = vmul.f32 %v2553, 0.0625
      %v2555 = vsel %vm975, %v2543, 0.0
      %v2556 = vsel %vm975, %v2544, 0.0
      %v2557 = vadd.f32 %v2555, %v2556
      %v2558 = vrot.slane %v2557, 4
      %v2559 = vadd.f32 %v2557, %v2558
      %v2560 = vrot.slane %v2559, 2
      %v2561 = vadd.f32 %v2559, %v2560
      %v2562 = vrot.slane %v2561, 1
      %v2563 = vadd.f32 %v2561, %v2562
      %v2564 = vmul.f32 %v2563, 0.0625
      %v2565 = vsel %vm975, %v1950, -inf
      %v2566 = vsel %vm975, %v1951, -inf
      %v2567 = vmax.f32 %v2565, %v2566
      %v2568 = vrot.slane %v2567, 4
      %v2569 = vmax.f32 %v2567, %v2568
      %v2570 = vrot.slane %v2569, 2
      %v2571 = vmax.f32 %v2569, %v2570
      %v2572 = vrot.slane %v2571, 1
      %v2573 = vmax.f32 %v2571, %v2572
      %v2574 = vsel %vm975, %v2543, -inf
      %v2575 = vsel %vm975, %v2544, -inf
      %v2576 = vmax.f32 %v2574, %v2575
      %v2577 = vrot.slane %v2576, 4
      %v2578 = vmax.f32 %v2576, %v2577
      %v2579 = vrot.slane %v2578, 2
      %v2580 = vmax.f32 %v2578, %v2579
      %v2581 = vrot.slane %v2580, 1
      %v2582 = vmax.f32 %v2580, %v2581
      %v2583 = vsel %vm955, %v2554, %v2564
      %v2584 = vsel %vm943, %v2583, %v2573
      %v2585 = vsel %vm874, %v2584, %v2582
      %vm2586 = vcmask 125952
      %2587 = vst.msk [vmem:[%s762] sm:$0xf] %vm2586, %v2585
      %p2588 = scmp.lt.s32.totalorder %s36, 1
      %s2589 = scalar_select %p2588, %s36, 1
      %s2590 = smul.addr %s2589, 4
      %s2591 = scalar_lea.vmem %s25, %s2590
      // Predicated region
      $region121: #{resnet_combined_layers_features.1} parent=119 // pred_check
        %p2592 = pneg %p584
      $region122: #{resnet_combined_layers_features.1} parent=119 // pred_check_branch
        %2594 = sbr.rel (%p2592) target = $region124
      $region123: #{resnet_combined_layers_features.1} parent=119 // pred_region
        _
      $region124: #{resnet_combined_layers_features.1} parent=119 // pred_fallthru
        _
    $region120: #{resnet_combined_layers_features.1} parent=5 // pred_fallthru
      _
    %p2595 = scmp.le.s32.totalorder 2, %s31
    // Predicated region
    $region125: #{resnet_combined_layers_features.1} parent=5 // pred_check
      %p2596 = pneg %p2595
    $region126: #{resnet_combined_layers_features.1} parent=5 // pred_check_branch
      %2598 = sbr.rel (%p2596) target = $region128
    $region127: #{resnet_combined_layers_features.1} parent=5 // pred_region
      %s2599 = ssub.s32 %s31, 2
      // Predicated region
      $region129: #{resnet_combined_layers_features.1} parent=127 // pred_check
        %p2600 = pneg %p590
      $region130: #{resnet_combined_layers_features.1} parent=127 // pred_check_branch
        %2602 = sbr.rel (%p2600) target = $region132
      $region131: #{resnet_combined_layers_features.1} parent=127 // pred_region
        %p2603 = scmp.lt.s32.totalorder %s37, 1
        %s2604 = scalar_select %p2603, %s37, 1
        %s2605 = smul.addr %s2604, 4
        %s2606 = scalar_lea.vmem %s25, %s2605
      $region132: #{resnet_combined_layers_features.1} parent=127 // pred_fallthru
        _
    $region128: #{resnet_combined_layers_features.1} parent=5 // pred_fallthru
      _
  $region6: #{resnet_combined_layers_features.1} parent=0 // loop_footer
    %s35 = sadd.s32 1, %s31
  $region7: #{resnet_combined_layers_features.1} parent=0 // loop_footer_branch
    %30 = sbr.rel target = $region3
  $region8: #{resnet_combined_layers_features.1} parent=0 // loop_exit
    _

</llo_original>
